<compile_context>
chip_gen: v7x
topology: tpu7x:2x2x1
jax: 0.10.0
libtpu: 0.0.40
codegen_flags: <defaults>
</compile_context>

<pallas_src>
import jax
import jax.numpy as jnp
from jax.experimental import pallas as pl
from jax.experimental.pallas import tpu as pltpu

LN_EPS = 1e-5                      # torch.nn.LayerNorm default
_INV_SQRT2 = 0.7071067811865476
MATMUL_DTYPE = jnp.bfloat16        # MXU operands; accumulation stays f32


def _gelu(x):
    # exact (erf) GELU, matching torch.nn.GELU default
    return 0.5 * x * (1.0 + jax.lax.erf(x * _INV_SQRT2))


# ----------------------------------------------------------------------------
# Single fused Pallas kernel: feature_expansion -> {GraphConv, Transformer} -> fusion
# ----------------------------------------------------------------------------
def _forward_kernel(x_ref, sq_ref, w1_ref, w2_ref, wfus_ref, vecs_ref, b1_ref,
                    o_ref, cat_ref):
    num_layers = w1_ref.shape[0]
    H = x_ref.shape[1]

    def vec(i):                                  # (1, H) f32 row from the slab
        return vecs_ref[i:i + 1, :]

    def ln(y, gi, bi):
        mu = jnp.mean(y, axis=-1, keepdims=True)
        var = jnp.mean(jnp.square(y - mu), axis=-1, keepdims=True)
        return (y - mu) * jax.lax.rsqrt(var + LN_EPS) * vec(gi) + vec(bi)

    def mm(y, w, b):                             # bf16 operands, f32 MXU accumulate
        return jnp.dot(y.astype(w.dtype), w,
                       preferred_element_type=jnp.float32) + b

    x = x_ref[...]                               # (B, H) f32, features zero-padded

    # feature_expansion: Linear + LayerNorm + GELU
    h = _gelu(ln(mm(x, sq_ref[0], vec(0)), 1, 2))
    # GraphConvLayer (edge_index unused by torch forward): Linear + LN + GELU
    g = _gelu(ln(mm(h, sq_ref[1], vec(3)), 4, 5))

    # TransformerEncoder on a length-1 sequence (static unroll over layers)
    t = h
    for L in range(num_layers):
        v = 6 + 6 * L
        # MHA for seq_len==1: softmax == 1 -> folded proj(v_proj(.)); dropout = id
        t = t + mm(ln(t, v, v + 1), sq_ref[2 + L], vec(v + 2))
        # FFN: Linear -> GELU -> Linear
        ff = _gelu(mm(ln(t, v + 3, v + 4), w1_ref[L], b1_ref[L:L + 1, :]))
        t = t + mm(ff, w2_ref[L], vec(v + 5))
    base = 6 + 6 * num_layers
    t = ln(t, base, base + 1)                    # final encoder LayerNorm

    # fusion Linear over concat([g, t]): one K=2H MXU push via a (B, 2H) scratch
    cat_ref[:, :H] = g.astype(cat_ref.dtype)
    cat_ref[:, H:] = t.astype(cat_ref.dtype)
    y = jnp.dot(cat_ref[...], wfus_ref[...],
                preferred_element_type=jnp.float32) + vec(base + 2)
    o_ref[...] = _gelu(ln(y, base + 3, base + 4))


def enhanced_steady_path(x, packed):
    B, F = x.shape
    H = packed["wfus"].shape[1]
    num_layers = packed["w1"].shape[0]
    dff = packed["w1"].shape[2]

    # zero-pad the feature dim so the input is a full lane-dense (B, 128) tile
    x_pad = jnp.zeros((B, H), jnp.float32).at[:, :F].set(x.astype(jnp.float32))

    # advisory cost estimate (static python ints)
    macs_per_row = H * H * (2 + num_layers + 2) + num_layers * 2 * H * dff
    flops = 2 * macs_per_row * B
    bytes_accessed = (sum(int(a.size) * a.dtype.itemsize for a in packed.values())
                      + int(x_pad.size) * 4 + B * H * 4)
    transcendentals = B * (2 * H + num_layers * dff + H)   # GELU erf calls

    vmem = pl.BlockSpec(memory_space=pltpu.MemorySpace.VMEM)
    # NOTE: gridless single call is the right design at small batch (all weights
    # + activations resident in VMEM).  For large batches, add a batch grid axis
    # with dimension_semantics=("parallel",) to shard across v7x's 2 TensorCores.
    return pl.pallas_call(
        _forward_kernel,
        out_shape=jax.ShapeDtypeStruct((B, H), jnp.float32),
        in_specs=[vmem] * 7,
        out_specs=vmem,
        scratch_shapes=[pltpu.VMEM((B, 2 * H), MATMUL_DTYPE)],
        cost_estimate=pl.CostEstimate(flops=flops,
                                      transcendentals=transcendentals,
                                      bytes_accessed=bytes_accessed),
    )(x_pad, packed["sq"], packed["w1"], packed["w2"], packed["wfus"],
      packed["vecs"], packed["b1"])


# ----------------------------------------------------------------------------
# Deterministic raw (f32, unfolded) parameters mirroring the PyTorch __init__
# ----------------------------------------------------------------------------
def init_raw_params(key, input_dim=10, hidden_dim=128, num_layers=2, scale=0.1):
    dff = hidden_dim * 4
    keys = iter(jax.random.split(key, 128))
    nk = lambda: next(keys)

    def lin(d_in, d_out):
        w = scale * jax.random.normal(nk(), (d_in, d_out), jnp.float32)
        b = scale * jax.random.normal(nk(), (d_out,), jnp.float32)
        return w, b

    ones = jnp.ones((hidden_dim,), jnp.float32)
    zeros = jnp.zeros((hidden_dim,), jnp.float32)

    fe_w, fe_b = lin(input_dim, hidden_dim)
    gnn_w, gnn_b = lin(hidden_dim, hidden_dim)
    layers = []
    for _ in range(num_layers):
        # q_proj / k_proj exist in torch but cancel for seq_len == 1 (softmax
        # over one key == 1); they never affect the output, so not created.
        vw, vb = lin(hidden_dim, hidden_dim)     # v_proj
        pw, pb = lin(hidden_dim, hidden_dim)     # proj
        w1, b1 = lin(hidden_dim, dff)
        w2, b2 = lin(dff, hidden_dim)
        layers.append(dict(vw=vw, vb=vb, pw=pw, pb=pb, w1=w1, b1=b1, w2=w2, b2=b2,
                           ln1_g=ones, ln1_b=zeros, ln2_g=ones, ln2_b=zeros))
    fus_w, fus_b = lin(2 * hidden_dim, hidden_dim)
    return dict(fe_w=fe_w, fe_b=fe_b, fe_g=ones, fe_beta=zeros,
                gnn_w=gnn_w, gnn_b=gnn_b, gnn_g=ones, gnn_beta=zeros,
                layers=layers, lnf_g=ones, lnf_b=zeros,
                fus_w=fus_w, fus_b=fus_b, fus_g=ones, fus_beta=zeros)


# ----------------------------------------------------------------------------
# Pack the raw params into 6 VMEM-friendly slabs (folded MHA, padded fe.w)
# ----------------------------------------------------------------------------
def pack_params(raw, hidden_dim):
    H = hidden_dim
    fe_w_pad = jnp.zeros((H, H), jnp.float32).at[:raw["fe_w"].shape[0]].set(raw["fe_w"])
    sq = [fe_w_pad, raw["gnn_w"]]
    vecs = [raw["fe_b"], raw["fe_g"], raw["fe_beta"],
            raw["gnn_b"], raw["gnn_g"], raw["gnn_beta"]]
    w1s, w2s, b1s = [], [], []
    for lp in raw["layers"]:
        attn_w = lp["vw"] @ lp["pw"]                  # fold proj(v_proj(.)) in f32
        attn_b = lp["vb"] @ lp["pw"] + lp["pb"]
        sq.append(attn_w)
        vecs += [lp["ln1_g"], lp["ln1_b"], attn_b,
                 lp["ln2_g"], lp["ln2_b"], lp["b2"]]
        w1s.append(lp["w1"]); w2s.append(lp["w2"]); b1s.append(lp["b1"])
    vecs += [raw["lnf_g"], raw["lnf_b"],
             raw["fus_b"], raw["fus_g"], raw["fus_beta"]]
    return dict(
        sq=jnp.stack(sq).astype(MATMUL_DTYPE),        # (2+L, H, H) bf16
        w1=jnp.stack(w1s).astype(MATMUL_DTYPE),       # (L, H, 4H) bf16
        w2=jnp.stack(w2s).astype(MATMUL_DTYPE),       # (L, 4H, H) bf16
        wfus=raw["fus_w"].astype(MATMUL_DTYPE),       # (2H, H)    bf16
        vecs=jnp.stack(vecs),                         # (23, H)    f32
        b1=jnp.stack(b1s),                            # (L, 4H)    f32
    )


# ----------------------------------------------------------------------------
# References for self-validation
# ----------------------------------------------------------------------------
def _ln(y, g, b):
    mu = jnp.mean(y, axis=-1, keepdims=True)
    var = jnp.mean(jnp.square(y - mu), axis=-1, keepdims=True)
    return (y - mu) * jax.lax.rsqrt(var + LN_EPS) * g + b


def _reference_packed(x, packed):
    """Mirrors the kernel math exactly (same packed bf16 weights)."""
    H = packed["wfus"].shape[1]
    L = packed["w1"].shape[0]
    xp = jnp.zeros((x.shape[0], H), jnp.float32).at[:, :x.shape[1]].set(x)
    vecs = packed["vecs"]
    vec = lambda i: vecs[i:i + 1]
    mm = lambda y, w, b: jnp.dot(y.astype(w.dtype), w,
                                 preferred_element_type=jnp.float32) + b
    h = _gelu(_ln(mm(xp, packed["sq"][0], vec(0)), vec(1), vec(2)))
    g = _gelu(_ln(mm(h, packed["sq"][1], vec(3)), vec(4), vec(5)))
    t = h
    for l in range(L):
        v = 6 + 6 * l
        t = t + mm(_ln(t, vec(v), vec(v + 1)), packed["sq"][2 + l], vec(v + 2))
        ff = _gelu(mm(_ln(t, vec(v + 3), vec(v + 4)), packed["w1"][l],
                      packed["b1"][l:l + 1]))
        t = t + mm(ff, packed["w2"][l], vec(v + 5))
    base = 6 + 6 * L
    t = _ln(t, vec(base), vec(base + 1))
    cat = jnp.concatenate([g, t], axis=-1).astype(packed["wfus"].dtype)
    y = jnp.dot(cat, packed["wfus"], preferred_element_type=jnp.float32) + vec(base + 2)
    return _gelu(_ln(y, vec(base + 3), vec(base + 4)))


def _reference_f32(x, raw):
    """Unfolded f32 reference with the original torch layer structure (eval mode)."""
    h = _gelu(_ln(x @ raw["fe_w"] + raw["fe_b"], raw["fe_g"], raw["fe_beta"]))
    g = _gelu(_ln(h @ raw["gnn_w"] + raw["gnn_b"], raw["gnn_g"], raw["gnn_beta"]))
    t = h
    for lp in raw["layers"]:
        n1 = _ln(t, lp["ln1_g"], lp["ln1_b"])
        v = n1 @ lp["vw"] + lp["vb"]         # seq_len==1: softmax over one key == 1
        t = t + (v @ lp["pw"] + lp["pb"])
        n2 = _ln(t, lp["ln2_g"], lp["ln2_b"])
        t = t + _gelu(n2 @ lp["w1"] + lp["b1"]) @ lp["w2"] + lp["b2"]
    t = _ln(t, raw["lnf_g"], raw["lnf_b"])
    y = jnp.concatenate([g, t], axis=-1) @ raw["fus_w"] + raw["fus_b"]
    return _gelu(_ln(y, raw["fus_g"], raw["fus_beta"]))


if __name__ == "__main__":
    B, INPUT_DIM, HIDDEN, NUM_LAYERS = 8, 10, 128, 2
    key = jax.random.PRNGKey(0)
    pkey, xkey = jax.random.split(key)
    raw = init_raw_params(pkey, input_dim=INPUT_DIM, hidden_dim=HIDDEN,
                          num_layers=NUM_LAYERS)
    packed = pack_params(raw, HIDDEN)
    x = jax.random.normal(xkey, (B, INPUT_DIM), jnp.float32)

    fwd = jax.jit(enhanced_steady_path)
    out = fwd(x, packed)
    jax.block_until_ready(out)

    assert out.shape == (B, HIDDEN)
    assert bool(jnp.all(jnp.isfinite(out)))

    # tight check vs a JAX reference using the SAME packed bf16 weights
    ref_bf16 = _reference_packed(x, packed)
    err_bf16 = float(jnp.max(jnp.abs(out - ref_bf16)))
    assert err_bf16 < 2e-3, f"mismatch vs packed-bf16 reference: {err_bf16}"

    # loose check vs the unfolded f32 torch-semantics reference (bf16 rounding only)
    ref_f32 = _reference_f32(x, raw)
    err_f32 = float(jnp.max(jnp.abs(out - ref_f32)))
    assert err_f32 < 0.15, f"mismatch vs unfolded f32 reference: {err_f32}"

    print("KERNEL_OK")
</pallas_src>

<mosaic_0001>
module attributes {stable_mosaic.version = 11 : i64} {
  func.func @_forward_kernel(%arg0: memref<8x128xf32, #tpu.memory_space<vmem>>, %arg1: memref<4x128x128xbf16, #tpu.memory_space<vmem>>, %arg2: memref<2x128x512xbf16, #tpu.memory_space<vmem>>, %arg3: memref<2x512x128xbf16, #tpu.memory_space<vmem>>, %arg4: memref<256x128xbf16, #tpu.memory_space<vmem>>, %arg5: memref<23x128xf32, #tpu.memory_space<vmem>>, %arg6: memref<2x512xf32, #tpu.memory_space<vmem>>, %arg7: memref<8x128xf32, #tpu.memory_space<vmem>>, %arg8: memref<8x256xbf16, #tpu.memory_space<vmem>>) attributes {dimension_semantics = [], scalar_prefetch = 0 : i64, scratch_operands = 1 : i64, tpu.core_type = #tpu.core_type<tc>} {
    %c0 = arith.constant 0 : index
    %c0_0 = arith.constant 0 : index
    %0 = vector.load %arg0[%c0, %c0_0] : memref<8x128xf32, #tpu.memory_space<vmem>>, vector<8x128xf32>
    %c0_1 = arith.constant 0 : index
    %c0_2 = arith.constant 0 : index
    %c0_3 = arith.constant 0 : index
    %1 = vector.load %arg1[%c0_1, %c0_2, %c0_3] : memref<4x128x128xbf16, #tpu.memory_space<vmem>>, vector<1x128x128xbf16>
    %2 = vector.shape_cast %1 : vector<1x128x128xbf16> to vector<128x128xbf16>
    %c0_4 = arith.constant 0 : index
    %c0_5 = arith.constant 0 : index
    %3 = vector.load %arg5[%c0_4, %c0_5] : memref<23x128xf32, #tpu.memory_space<vmem>>, vector<1x128xf32>
    %4 = arith.truncf %0 : vector<8x128xf32> to vector<8x128xbf16>
    %cst = arith.constant dense<0.000000e+00> : vector<8x128xf32>
    %5 = tpu.matmul %4, %2, %cst {dimension_numbers = #tpu.dot_dimension_numbers<[1], [0], [0], [1], [0, 0, 1, 1], [], []>} : vector<8x128xbf16>, vector<128x128xbf16>, vector<8x128xf32> -> vector<8x128xf32>
    %6 = vector.broadcast %3 : vector<1x128xf32> to vector<8x128xf32>
    %7 = arith.addf %5, %6 : vector<8x128xf32>
    %cst_6 = arith.constant dense<0.000000e+00> : vector<8xf32>
    %8 = vector.multi_reduction <add>, %7, %cst_6 [1] : vector<8x128xf32> to vector<8xf32>
    %9 = vector.shape_cast %8 : vector<8xf32> to vector<8x1xf32>
    %cst_7 = arith.constant 1.280000e+02 : f32
    %10 = vector.broadcast %cst_7 : f32 to vector<8x1xf32>
    %11 = arith.divf %9, %10 : vector<8x1xf32>
    %12 = vector.broadcast %11 : vector<8x1xf32> to vector<8x128xf32>
    %13 = arith.subf %7, %12 : vector<8x128xf32>
    %14 = arith.mulf %13, %13 : vector<8x128xf32>
    %cst_8 = arith.constant dense<0.000000e+00> : vector<8xf32>
    %15 = vector.multi_reduction <add>, %14, %cst_8 [1] : vector<8x128xf32> to vector<8xf32>
    %16 = vector.shape_cast %15 : vector<8xf32> to vector<8x1xf32>
    %cst_9 = arith.constant 1.280000e+02 : f32
    %17 = vector.broadcast %cst_9 : f32 to vector<8x1xf32>
    %18 = arith.divf %16, %17 : vector<8x1xf32>
    %19 = vector.broadcast %11 : vector<8x1xf32> to vector<8x128xf32>
    %20 = arith.subf %7, %19 : vector<8x128xf32>
    %cst_10 = arith.constant 9.99999974E-6 : f32
    %21 = vector.broadcast %cst_10 : f32 to vector<8x1xf32>
    %22 = arith.addf %18, %21 : vector<8x1xf32>
    %23 = math.rsqrt %22 : vector<8x1xf32>
    %24 = vector.broadcast %23 : vector<8x1xf32> to vector<8x128xf32>
    %25 = arith.mulf %20, %24 : vector<8x128xf32>
    %c1 = arith.constant 1 : index
    %c0_11 = arith.constant 0 : index
    %26 = vector.load %arg5[%c1, %c0_11] : memref<23x128xf32, #tpu.memory_space<vmem>>, vector<1x128xf32>
    %27 = vector.broadcast %26 : vector<1x128xf32> to vector<8x128xf32>
    %28 = arith.mulf %25, %27 : vector<8x128xf32>
    %c2 = arith.constant 2 : index
    %c0_12 = arith.constant 0 : index
    %29 = vector.load %arg5[%c2, %c0_12] : memref<23x128xf32, #tpu.memory_space<vmem>>, vector<1x128xf32>
    %30 = vector.broadcast %29 : vector<1x128xf32> to vector<8x128xf32>
    %31 = arith.addf %28, %30 : vector<8x128xf32>
    %cst_13 = arith.constant 5.000000e-01 : f32
    %32 = vector.broadcast %cst_13 : f32 to vector<8x128xf32>
    %33 = arith.mulf %32, %31 : vector<8x128xf32>
    %cst_14 = arith.constant 0.707106769 : f32
    %34 = vector.broadcast %cst_14 : f32 to vector<8x128xf32>
    %35 = arith.mulf %31, %34 : vector<8x128xf32>
    %36 = math.erf %35 : vector<8x128xf32>
    %cst_15 = arith.constant 1.000000e+00 : f32
    %37 = vector.broadcast %cst_15 : f32 to vector<8x128xf32>
    %38 = arith.addf %37, %36 : vector<8x128xf32>
    %39 = arith.mulf %33, %38 : vector<8x128xf32>
    %c1_16 = arith.constant 1 : index
    %c0_17 = arith.constant 0 : index
    %c0_18 = arith.constant 0 : index
    %40 = vector.load %arg1[%c1_16, %c0_17, %c0_18] : memref<4x128x128xbf16, #tpu.memory_space<vmem>>, vector<1x128x128xbf16>
    %41 = vector.shape_cast %40 : vector<1x128x128xbf16> to vector<128x128xbf16>
    %c3 = arith.constant 3 : index
    %c0_19 = arith.constant 0 : index
    %42 = vector.load %arg5[%c3, %c0_19] : memref<23x128xf32, #tpu.memory_space<vmem>>, vector<1x128xf32>
    %43 = arith.truncf %39 : vector<8x128xf32> to vector<8x128xbf16>
    %cst_20 = arith.constant dense<0.000000e+00> : vector<8x128xf32>
    %44 = tpu.matmul %43, %41, %cst_20 {dimension_numbers = #tpu.dot_dimension_numbers<[1], [0], [0], [1], [0, 0, 1, 1], [], []>} : vector<8x128xbf16>, vector<128x128xbf16>, vector<8x128xf32> -> vector<8x128xf32>
    %45 = vector.broadcast %42 : vector<1x128xf32> to vector<8x128xf32>
    %46 = arith.addf %44, %45 : vector<8x128xf32>
    %cst_21 = arith.constant dense<0.000000e+00> : vector<8xf32>
    %47 = vector.multi_reduction <add>, %46, %cst_21 [1] : vector<8x128xf32> to vector<8xf32>
    %48 = vector.shape_cast %47 : vector<8xf32> to vector<8x1xf32>
    %cst_22 = arith.constant 1.280000e+02 : f32
    %49 = vector.broadcast %cst_22 : f32 to vector<8x1xf32>
    %50 = arith.divf %48, %49 : vector<8x1xf32>
    %51 = vector.broadcast %50 : vector<8x1xf32> to vector<8x128xf32>
    %52 = arith.subf %46, %51 : vector<8x128xf32>
    %53 = arith.mulf %52, %52 : vector<8x128xf32>
    %cst_23 = arith.constant dense<0.000000e+00> : vector<8xf32>
    %54 = vector.multi_reduction <add>, %53, %cst_23 [1] : vector<8x128xf32> to vector<8xf32>
    %55 = vector.shape_cast %54 : vector<8xf32> to vector<8x1xf32>
    %cst_24 = arith.constant 1.280000e+02 : f32
    %56 = vector.broadcast %cst_24 : f32 to vector<8x1xf32>
    %57 = arith.divf %55, %56 : vector<8x1xf32>
    %58 = vector.broadcast %50 : vector<8x1xf32> to vector<8x128xf32>
    %59 = arith.subf %46, %58 : vector<8x128xf32>
    %cst_25 = arith.constant 9.99999974E-6 : f32
    %60 = vector.broadcast %cst_25 : f32 to vector<8x1xf32>
    %61 = arith.addf %57, %60 : vector<8x1xf32>
    %62 = math.rsqrt %61 : vector<8x1xf32>
    %63 = vector.broadcast %62 : vector<8x1xf32> to vector<8x128xf32>
    %64 = arith.mulf %59, %63 : vector<8x128xf32>
    %c4 = arith.constant 4 : index
    %c0_26 = arith.constant 0 : index
    %65 = vector.load %arg5[%c4, %c0_26] : memref<23x128xf32, #tpu.memory_space<vmem>>, vector<1x128xf32>
    %66 = vector.broadcast %65 : vector<1x128xf32> to vector<8x128xf32>
    %67 = arith.mulf %64, %66 : vector<8x128xf32>
    %c5 = arith.constant 5 : index
    %c0_27 = arith.constant 0 : index
    %68 = vector.load %arg5[%c5, %c0_27] : memref<23x128xf32, #tpu.memory_space<vmem>>, vector<1x128xf32>
    %69 = vector.broadcast %68 : vector<1x128xf32> to vector<8x128xf32>
    %70 = arith.addf %67, %69 : vector<8x128xf32>
    %cst_28 = arith.constant 5.000000e-01 : f32
    %71 = vector.broadcast %cst_28 : f32 to vector<8x128xf32>
    %72 = arith.mulf %71, %70 : vector<8x128xf32>
    %cst_29 = arith.constant 0.707106769 : f32
    %73 = vector.broadcast %cst_29 : f32 to vector<8x128xf32>
    %74 = arith.mulf %70, %73 : vector<8x128xf32>
    %75 = math.erf %74 : vector<8x128xf32>
    %cst_30 = arith.constant 1.000000e+00 : f32
    %76 = vector.broadcast %cst_30 : f32 to vector<8x128xf32>
    %77 = arith.addf %76, %75 : vector<8x128xf32>
    %78 = arith.mulf %72, %77 : vector<8x128xf32>
    %cst_31 = arith.constant dense<0.000000e+00> : vector<8xf32>
    %79 = vector.multi_reduction <add>, %39, %cst_31 [1] : vector<8x128xf32> to vector<8xf32>
    %80 = vector.shape_cast %79 : vector<8xf32> to vector<8x1xf32>
    %cst_32 = arith.constant 1.280000e+02 : f32
    %81 = vector.broadcast %cst_32 : f32 to vector<8x1xf32>
    %82 = arith.divf %80, %81 : vector<8x1xf32>
    %83 = vector.broadcast %82 : vector<8x1xf32> to vector<8x128xf32>
    %84 = arith.subf %39, %83 : vector<8x128xf32>
    %85 = arith.mulf %84, %84 : vector<8x128xf32>
    %cst_33 = arith.constant dense<0.000000e+00> : vector<8xf32>
    %86 = vector.multi_reduction <add>, %85, %cst_33 [1] : vector<8x128xf32> to vector<8xf32>
    %87 = vector.shape_cast %86 : vector<8xf32> to vector<8x1xf32>
    %cst_34 = arith.constant 1.280000e+02 : f32
    %88 = vector.broadcast %cst_34 : f32 to vector<8x1xf32>
    %89 = arith.divf %87, %88 : vector<8x1xf32>
    %90 = vector.broadcast %82 : vector<8x1xf32> to vector<8x128xf32>
    %91 = arith.subf %39, %90 : vector<8x128xf32>
    %cst_35 = arith.constant 9.99999974E-6 : f32
    %92 = vector.broadcast %cst_35 : f32 to vector<8x1xf32>
    %93 = arith.addf %89, %92 : vector<8x1xf32>
    %94 = math.rsqrt %93 : vector<8x1xf32>
    %95 = vector.broadcast %94 : vector<8x1xf32> to vector<8x128xf32>
    %96 = arith.mulf %91, %95 : vector<8x128xf32>
    %c6 = arith.constant 6 : index
    %c0_36 = arith.constant 0 : index
    %97 = vector.load %arg5[%c6, %c0_36] : memref<23x128xf32, #tpu.memory_space<vmem>>, vector<1x128xf32>
    %98 = vector.broadcast %97 : vector<1x128xf32> to vector<8x128xf32>
    %99 = arith.mulf %96, %98 : vector<8x128xf32>
    %c7 = arith.constant 7 : index
    %c0_37 = arith.constant 0 : index
    %100 = vector.load %arg5[%c7, %c0_37] : memref<23x128xf32, #tpu.memory_space<vmem>>, vector<1x128xf32>
    %101 = vector.broadcast %100 : vector<1x128xf32> to vector<8x128xf32>
    %102 = arith.addf %99, %101 : vector<8x128xf32>
    %c2_38 = arith.constant 2 : index
    %c0_39 = arith.constant 0 : index
    %c0_40 = arith.constant 0 : index
    %103 = vector.load %arg1[%c2_38, %c0_39, %c0_40] : memref<4x128x128xbf16, #tpu.memory_space<vmem>>, vector<1x128x128xbf16>
    %104 = vector.shape_cast %103 : vector<1x128x128xbf16> to vector<128x128xbf16>
    %c8 = arith.constant 8 : index
    %c0_41 = arith.constant 0 : index
    %105 = vector.load %arg5[%c8, %c0_41] : memref<23x128xf32, #tpu.memory_space<vmem>>, vector<1x128xf32>
    %106 = arith.truncf %102 : vector<8x128xf32> to vector<8x128xbf16>
    %cst_42 = arith.constant dense<0.000000e+00> : vector<8x128xf32>
    %107 = tpu.matmul %106, %104, %cst_42 {dimension_numbers = #tpu.dot_dimension_numbers<[1], [0], [0], [1], [0, 0, 1, 1], [], []>} : vector<8x128xbf16>, vector<128x128xbf16>, vector<8x128xf32> -> vector<8x128xf32>
    %108 = vector.broadcast %105 : vector<1x128xf32> to vector<8x128xf32>
    %109 = arith.addf %107, %108 : vector<8x128xf32>
    %110 = arith.addf %39, %109 : vector<8x128xf32>
    %cst_43 = arith.constant dense<0.000000e+00> : vector<8xf32>
    %111 = vector.multi_reduction <add>, %110, %cst_43 [1] : vector<8x128xf32> to vector<8xf32>
    %112 = vector.shape_cast %111 : vector<8xf32> to vector<8x1xf32>
    %cst_44 = arith.constant 1.280000e+02 : f32
    %113 = vector.broadcast %cst_44 : f32 to vector<8x1xf32>
    %114 = arith.divf %112, %113 : vector<8x1xf32>
    %115 = vector.broadcast %114 : vector<8x1xf32> to vector<8x128xf32>
    %116 = arith.subf %110, %115 : vector<8x128xf32>
    %117 = arith.mulf %116, %116 : vector<8x128xf32>
    %cst_45 = arith.constant dense<0.000000e+00> : vector<8xf32>
    %118 = vector.multi_reduction <add>, %117, %cst_45 [1] : vector<8x128xf32> to vector<8xf32>
    %119 = vector.shape_cast %118 : vector<8xf32> to vector<8x1xf32>
    %cst_46 = arith.constant 1.280000e+02 : f32
    %120 = vector.broadcast %cst_46 : f32 to vector<8x1xf32>
    %121 = arith.divf %119, %120 : vector<8x1xf32>
    %122 = vector.broadcast %114 : vector<8x1xf32> to vector<8x128xf32>
    %123 = arith.subf %110, %122 : vector<8x128xf32>
    %cst_47 = arith.constant 9.99999974E-6 : f32
    %124 = vector.broadcast %cst_47 : f32 to vector<8x1xf32>
    %125 = arith.addf %121, %124 : vector<8x1xf32>
    %126 = math.rsqrt %125 : vector<8x1xf32>
    %127 = vector.broadcast %126 : vector<8x1xf32> to vector<8x128xf32>
    %128 = arith.mulf %123, %127 : vector<8x128xf32>
    %c9 = arith.constant 9 : index
    %c0_48 = arith.constant 0 : index
    %129 = vector.load %arg5[%c9, %c0_48] : memref<23x128xf32, #tpu.memory_space<vmem>>, vector<1x128xf32>
    %130 = vector.broadcast %129 : vector<1x128xf32> to vector<8x128xf32>
    %131 = arith.mulf %128, %130 : vector<8x128xf32>
    %c10 = arith.constant 10 : index
    %c0_49 = arith.constant 0 : index
    %132 = vector.load %arg5[%c10, %c0_49] : memref<23x128xf32, #tpu.memory_space<vmem>>, vector<1x128xf32>
    %133 = vector.broadcast %132 : vector<1x128xf32> to vector<8x128xf32>
    %134 = arith.addf %131, %133 : vector<8x128xf32>
    %c0_50 = arith.constant 0 : index
    %c0_51 = arith.constant 0 : index
    %c0_52 = arith.constant 0 : index
    %135 = vector.load %arg2[%c0_50, %c0_51, %c0_52] : memref<2x128x512xbf16, #tpu.memory_space<vmem>>, vector<1x128x512xbf16>
    %136 = vector.shape_cast %135 : vector<1x128x512xbf16> to vector<128x512xbf16>
    %c0_53 = arith.constant 0 : index
    %c0_54 = arith.constant 0 : index
    %137 = vector.load %arg6[%c0_53, %c0_54] : memref<2x512xf32, #tpu.memory_space<vmem>>, vector<1x512xf32>
    %138 = arith.truncf %134 : vector<8x128xf32> to vector<8x128xbf16>
    %cst_55 = arith.constant dense<0.000000e+00> : vector<8x512xf32>
    %139 = tpu.matmul %138, %136, %cst_55 {dimension_numbers = #tpu.dot_dimension_numbers<[1], [0], [0], [1], [0, 0, 1, 1], [], []>} : vector<8x128xbf16>, vector<128x512xbf16>, vector<8x512xf32> -> vector<8x512xf32>
    %140 = vector.broadcast %137 : vector<1x512xf32> to vector<8x512xf32>
    %141 = arith.addf %139, %140 : vector<8x512xf32>
    %cst_56 = arith.constant 5.000000e-01 : f32
    %142 = vector.broadcast %cst_56 : f32 to vector<8x512xf32>
    %143 = arith.mulf %142, %141 : vector<8x512xf32>
    %cst_57 = arith.constant 0.707106769 : f32
    %144 = vector.broadcast %cst_57 : f32 to vector<8x512xf32>
    %145 = arith.mulf %141, %144 : vector<8x512xf32>
    %146 = math.erf %145 : vector<8x512xf32>
    %cst_58 = arith.constant 1.000000e+00 : f32
    %147 = vector.broadcast %cst_58 : f32 to vector<8x512xf32>
    %148 = arith.addf %147, %146 : vector<8x512xf32>
    %149 = arith.mulf %143, %148 : vector<8x512xf32>
    %c0_59 = arith.constant 0 : index
    %c0_60 = arith.constant 0 : index
    %c0_61 = arith.constant 0 : index
    %150 = vector.load %arg3[%c0_59, %c0_60, %c0_61] : memref<2x512x128xbf16, #tpu.memory_space<vmem>>, vector<1x512x128xbf16>
    %151 = vector.shape_cast %150 : vector<1x512x128xbf16> to vector<512x128xbf16>
    %c11 = arith.constant 11 : index
    %c0_62 = arith.constant 0 : index
    %152 = vector.load %arg5[%c11, %c0_62] : memref<23x128xf32, #tpu.memory_space<vmem>>, vector<1x128xf32>
    %153 = arith.truncf %149 : vector<8x512xf32> to vector<8x512xbf16>
    %cst_63 = arith.constant dense<0.000000e+00> : vector<8x128xf32>
    %154 = tpu.matmul %153, %151, %cst_63 {dimension_numbers = #tpu.dot_dimension_numbers<[1], [0], [0], [1], [0, 0, 1, 1], [], []>} : vector<8x512xbf16>, vector<512x128xbf16>, vector<8x128xf32> -> vector<8x128xf32>
    %155 = vector.broadcast %152 : vector<1x128xf32> to vector<8x128xf32>
    %156 = arith.addf %154, %155 : vector<8x128xf32>
    %157 = arith.addf %110, %156 : vector<8x128xf32>
    %cst_64 = arith.constant dense<0.000000e+00> : vector<8xf32>
    %158 = vector.multi_reduction <add>, %157, %cst_64 [1] : vector<8x128xf32> to vector<8xf32>
    %159 = vector.shape_cast %158 : vector<8xf32> to vector<8x1xf32>
    %cst_65 = arith.constant 1.280000e+02 : f32
    %160 = vector.broadcast %cst_65 : f32 to vector<8x1xf32>
    %161 = arith.divf %159, %160 : vector<8x1xf32>
    %162 = vector.broadcast %161 : vector<8x1xf32> to vector<8x128xf32>
    %163 = arith.subf %157, %162 : vector<8x128xf32>
    %164 = arith.mulf %163, %163 : vector<8x128xf32>
    %cst_66 = arith.constant dense<0.000000e+00> : vector<8xf32>
    %165 = vector.multi_reduction <add>, %164, %cst_66 [1] : vector<8x128xf32> to vector<8xf32>
    %166 = vector.shape_cast %165 : vector<8xf32> to vector<8x1xf32>
    %cst_67 = arith.constant 1.280000e+02 : f32
    %167 = vector.broadcast %cst_67 : f32 to vector<8x1xf32>
    %168 = arith.divf %166, %167 : vector<8x1xf32>
    %169 = vector.broadcast %161 : vector<8x1xf32> to vector<8x128xf32>
    %170 = arith.subf %157, %169 : vector<8x128xf32>
    %cst_68 = arith.constant 9.99999974E-6 : f32
    %171 = vector.broadcast %cst_68 : f32 to vector<8x1xf32>
    %172 = arith.addf %168, %171 : vector<8x1xf32>
    %173 = math.rsqrt %172 : vector<8x1xf32>
    %174 = vector.broadcast %173 : vector<8x1xf32> to vector<8x128xf32>
    %175 = arith.mulf %170, %174 : vector<8x128xf32>
    %c12 = arith.constant 12 : index
    %c0_69 = arith.constant 0 : index
    %176 = vector.load %arg5[%c12, %c0_69] : memref<23x128xf32, #tpu.memory_space<vmem>>, vector<1x128xf32>
    %177 = vector.broadcast %176 : vector<1x128xf32> to vector<8x128xf32>
    %178 = arith.mulf %175, %177 : vector<8x128xf32>
    %c13 = arith.constant 13 : index
    %c0_70 = arith.constant 0 : index
    %179 = vector.load %arg5[%c13, %c0_70] : memref<23x128xf32, #tpu.memory_space<vmem>>, vector<1x128xf32>
    %180 = vector.broadcast %179 : vector<1x128xf32> to vector<8x128xf32>
    %181 = arith.addf %178, %180 : vector<8x128xf32>
    %c3_71 = arith.constant 3 : index
    %c0_72 = arith.constant 0 : index
    %c0_73 = arith.constant 0 : index
    %182 = vector.load %arg1[%c3_71, %c0_72, %c0_73] : memref<4x128x128xbf16, #tpu.memory_space<vmem>>, vector<1x128x128xbf16>
    %183 = vector.shape_cast %182 : vector<1x128x128xbf16> to vector<128x128xbf16>
    %c14 = arith.constant 14 : index
    %c0_74 = arith.constant 0 : index
    %184 = vector.load %arg5[%c14, %c0_74] : memref<23x128xf32, #tpu.memory_space<vmem>>, vector<1x128xf32>
    %185 = arith.truncf %181 : vector<8x128xf32> to vector<8x128xbf16>
    %cst_75 = arith.constant dense<0.000000e+00> : vector<8x128xf32>
    %186 = tpu.matmul %185, %183, %cst_75 {dimension_numbers = #tpu.dot_dimension_numbers<[1], [0], [0], [1], [0, 0, 1, 1], [], []>} : vector<8x128xbf16>, vector<128x128xbf16>, vector<8x128xf32> -> vector<8x128xf32>
    %187 = vector.broadcast %184 : vector<1x128xf32> to vector<8x128xf32>
    %188 = arith.addf %186, %187 : vector<8x128xf32>
    %189 = arith.addf %157, %188 : vector<8x128xf32>
    %cst_76 = arith.constant dense<0.000000e+00> : vector<8xf32>
    %190 = vector.multi_reduction <add>, %189, %cst_76 [1] : vector<8x128xf32> to vector<8xf32>
    %191 = vector.shape_cast %190 : vector<8xf32> to vector<8x1xf32>
    %cst_77 = arith.constant 1.280000e+02 : f32
    %192 = vector.broadcast %cst_77 : f32 to vector<8x1xf32>
    %193 = arith.divf %191, %192 : vector<8x1xf32>
    %194 = vector.broadcast %193 : vector<8x1xf32> to vector<8x128xf32>
    %195 = arith.subf %189, %194 : vector<8x128xf32>
    %196 = arith.mulf %195, %195 : vector<8x128xf32>
    %cst_78 = arith.constant dense<0.000000e+00> : vector<8xf32>
    %197 = vector.multi_reduction <add>, %196, %cst_78 [1] : vector<8x128xf32> to vector<8xf32>
    %198 = vector.shape_cast %197 : vector<8xf32> to vector<8x1xf32>
    %cst_79 = arith.constant 1.280000e+02 : f32
    %199 = vector.broadcast %cst_79 : f32 to vector<8x1xf32>
    %200 = arith.divf %198, %199 : vector<8x1xf32>
    %201 = vector.broadcast %193 : vector<8x1xf32> to vector<8x128xf32>
    %202 = arith.subf %189, %201 : vector<8x128xf32>
    %cst_80 = arith.constant 9.99999974E-6 : f32
    %203 = vector.broadcast %cst_80 : f32 to vector<8x1xf32>
    %204 = arith.addf %200, %203 : vector<8x1xf32>
    %205 = math.rsqrt %204 : vector<8x1xf32>
    %206 = vector.broadcast %205 : vector<8x1xf32> to vector<8x128xf32>
    %207 = arith.mulf %202, %206 : vector<8x128xf32>
    %c15 = arith.constant 15 : index
    %c0_81 = arith.constant 0 : index
    %208 = vector.load %arg5[%c15, %c0_81] : memref<23x128xf32, #tpu.memory_space<vmem>>, vector<1x128xf32>
    %209 = vector.broadcast %208 : vector<1x128xf32> to vector<8x128xf32>
    %210 = arith.mulf %207, %209 : vector<8x128xf32>
    %c16 = arith.constant 16 : index
    %c0_82 = arith.constant 0 : index
    %211 = vector.load %arg5[%c16, %c0_82] : memref<23x128xf32, #tpu.memory_space<vmem>>, vector<1x128xf32>
    %212 = vector.broadcast %211 : vector<1x128xf32> to vector<8x128xf32>
    %213 = arith.addf %210, %212 : vector<8x128xf32>
    %c1_83 = arith.constant 1 : index
    %c0_84 = arith.constant 0 : index
    %c0_85 = arith.constant 0 : index
    %214 = vector.load %arg2[%c1_83, %c0_84, %c0_85] : memref<2x128x512xbf16, #tpu.memory_space<vmem>>, vector<1x128x512xbf16>
    %215 = vector.shape_cast %214 : vector<1x128x512xbf16> to vector<128x512xbf16>
    %c1_86 = arith.constant 1 : index
    %c0_87 = arith.constant 0 : index
    %216 = vector.load %arg6[%c1_86, %c0_87] : memref<2x512xf32, #tpu.memory_space<vmem>>, vector<1x512xf32>
    %217 = arith.truncf %213 : vector<8x128xf32> to vector<8x128xbf16>
    %cst_88 = arith.constant dense<0.000000e+00> : vector<8x512xf32>
    %218 = tpu.matmul %217, %215, %cst_88 {dimension_numbers = #tpu.dot_dimension_numbers<[1], [0], [0], [1], [0, 0, 1, 1], [], []>} : vector<8x128xbf16>, vector<128x512xbf16>, vector<8x512xf32> -> vector<8x512xf32>
    %219 = vector.broadcast %216 : vector<1x512xf32> to vector<8x512xf32>
    %220 = arith.addf %218, %219 : vector<8x512xf32>
    %cst_89 = arith.constant 5.000000e-01 : f32
    %221 = vector.broadcast %cst_89 : f32 to vector<8x512xf32>
    %222 = arith.mulf %221, %220 : vector<8x512xf32>
    %cst_90 = arith.constant 0.707106769 : f32
    %223 = vector.broadcast %cst_90 : f32 to vector<8x512xf32>
    %224 = arith.mulf %220, %223 : vector<8x512xf32>
    %225 = math.erf %224 : vector<8x512xf32>
    %cst_91 = arith.constant 1.000000e+00 : f32
    %226 = vector.broadcast %cst_91 : f32 to vector<8x512xf32>
    %227 = arith.addf %226, %225 : vector<8x512xf32>
    %228 = arith.mulf %222, %227 : vector<8x512xf32>
    %c1_92 = arith.constant 1 : index
    %c0_93 = arith.constant 0 : index
    %c0_94 = arith.constant 0 : index
    %229 = vector.load %arg3[%c1_92, %c0_93, %c0_94] : memref<2x512x128xbf16, #tpu.memory_space<vmem>>, vector<1x512x128xbf16>
    %230 = vector.shape_cast %229 : vector<1x512x128xbf16> to vector<512x128xbf16>
    %c17 = arith.constant 17 : index
    %c0_95 = arith.constant 0 : index
    %231 = vector.load %arg5[%c17, %c0_95] : memref<23x128xf32, #tpu.memory_space<vmem>>, vector<1x128xf32>
    %232 = arith.truncf %228 : vector<8x512xf32> to vector<8x512xbf16>
    %cst_96 = arith.constant dense<0.000000e+00> : vector<8x128xf32>
    %233 = tpu.matmul %232, %230, %cst_96 {dimension_numbers = #tpu.dot_dimension_numbers<[1], [0], [0], [1], [0, 0, 1, 1], [], []>} : vector<8x512xbf16>, vector<512x128xbf16>, vector<8x128xf32> -> vector<8x128xf32>
    %234 = vector.broadcast %231 : vector<1x128xf32> to vector<8x128xf32>
    %235 = arith.addf %233, %234 : vector<8x128xf32>
    %236 = arith.addf %189, %235 : vector<8x128xf32>
    %cst_97 = arith.constant dense<0.000000e+00> : vector<8xf32>
    %237 = vector.multi_reduction <add>, %236, %cst_97 [1] : vector<8x128xf32> to vector<8xf32>
    %238 = vector.shape_cast %237 : vector<8xf32> to vector<8x1xf32>
    %cst_98 = arith.constant 1.280000e+02 : f32
    %239 = vector.broadcast %cst_98 : f32 to vector<8x1xf32>
    %240 = arith.divf %238, %239 : vector<8x1xf32>
    %241 = vector.broadcast %240 : vector<8x1xf32> to vector<8x128xf32>
    %242 = arith.subf %236, %241 : vector<8x128xf32>
    %243 = arith.mulf %242, %242 : vector<8x128xf32>
    %cst_99 = arith.constant dense<0.000000e+00> : vector<8xf32>
    %244 = vector.multi_reduction <add>, %243, %cst_99 [1] : vector<8x128xf32> to vector<8xf32>
    %245 = vector.shape_cast %244 : vector<8xf32> to vector<8x1xf32>
    %cst_100 = arith.constant 1.280000e+02 : f32
    %246 = vector.broadcast %cst_100 : f32 to vector<8x1xf32>
    %247 = arith.divf %245, %246 : vector<8x1xf32>
    %248 = vector.broadcast %240 : vector<8x1xf32> to vector<8x128xf32>
    %249 = arith.subf %236, %248 : vector<8x128xf32>
    %cst_101 = arith.constant 9.99999974E-6 : f32
    %250 = vector.broadcast %cst_101 : f32 to vector<8x1xf32>
    %251 = arith.addf %247, %250 : vector<8x1xf32>
    %252 = math.rsqrt %251 : vector<8x1xf32>
    %253 = vector.broadcast %252 : vector<8x1xf32> to vector<8x128xf32>
    %254 = arith.mulf %249, %253 : vector<8x128xf32>
    %c18 = arith.constant 18 : index
    %c0_102 = arith.constant 0 : index
    %255 = vector.load %arg5[%c18, %c0_102] : memref<23x128xf32, #tpu.memory_space<vmem>>, vector<1x128xf32>
    %256 = vector.broadcast %255 : vector<1x128xf32> to vector<8x128xf32>
    %257 = arith.mulf %254, %256 : vector<8x128xf32>
    %c19 = arith.constant 19 : index
    %c0_103 = arith.constant 0 : index
    %258 = vector.load %arg5[%c19, %c0_103] : memref<23x128xf32, #tpu.memory_space<vmem>>, vector<1x128xf32>
    %259 = vector.broadcast %258 : vector<1x128xf32> to vector<8x128xf32>
    %260 = arith.addf %257, %259 : vector<8x128xf32>
    %261 = arith.truncf %78 : vector<8x128xf32> to vector<8x128xbf16>
    %c0_104 = arith.constant 0 : index
    %c0_105 = arith.constant 0 : index
    %262 = vector.load %arg8[%c0_104, %c0_105] : memref<8x256xbf16, #tpu.memory_space<vmem>>, vector<8x128xbf16>
    tpu.vector_store %arg8[%c0_104, %c0_105], %261 {strides = array<i32>} : memref<8x256xbf16, #tpu.memory_space<vmem>>, vector<8x128xbf16>,
    %263 = arith.truncf %260 : vector<8x128xf32> to vector<8x128xbf16>
    %c0_106 = arith.constant 0 : index
    %c128 = arith.constant 128 : index
    %264 = vector.load %arg8[%c0_106, %c128] : memref<8x256xbf16, #tpu.memory_space<vmem>>, vector<8x128xbf16>
    tpu.vector_store %arg8[%c0_106, %c128], %263 {strides = array<i32>} : memref<8x256xbf16, #tpu.memory_space<vmem>>, vector<8x128xbf16>,
    %c0_107 = arith.constant 0 : index
    %c0_108 = arith.constant 0 : index
    %265 = vector.load %arg8[%c0_107, %c0_108] : memref<8x256xbf16, #tpu.memory_space<vmem>>, vector<8x256xbf16>
    %c0_109 = arith.constant 0 : index
    %c0_110 = arith.constant 0 : index
    %266 = vector.load %arg4[%c0_109, %c0_110] : memref<256x128xbf16, #tpu.memory_space<vmem>>, vector<256x128xbf16>
    %cst_111 = arith.constant dense<0.000000e+00> : vector<8x128xf32>
    %267 = tpu.matmul %265, %266, %cst_111 {dimension_numbers = #tpu.dot_dimension_numbers<[1], [0], [0], [1], [0, 0, 1, 1], [], []>} : vector<8x256xbf16>, vector<256x128xbf16>, vector<8x128xf32> -> vector<8x128xf32>
    %c20 = arith.constant 20 : index
    %c0_112 = arith.constant 0 : index
    %268 = vector.load %arg5[%c20, %c0_112] : memref<23x128xf32, #tpu.memory_space<vmem>>, vector<1x128xf32>
    %269 = vector.broadcast %268 : vector<1x128xf32> to vector<8x128xf32>
    %270 = arith.addf %267, %269 : vector<8x128xf32>
    %cst_113 = arith.constant dense<0.000000e+00> : vector<8xf32>
    %271 = vector.multi_reduction <add>, %270, %cst_113 [1] : vector<8x128xf32> to vector<8xf32>
    %272 = vector.shape_cast %271 : vector<8xf32> to vector<8x1xf32>
    %cst_114 = arith.constant 1.280000e+02 : f32
    %273 = vector.broadcast %cst_114 : f32 to vector<8x1xf32>
    %274 = arith.divf %272, %273 : vector<8x1xf32>
    %275 = vector.broadcast %274 : vector<8x1xf32> to vector<8x128xf32>
    %276 = arith.subf %270, %275 : vector<8x128xf32>
    %277 = arith.mulf %276, %276 : vector<8x128xf32>
    %cst_115 = arith.constant dense<0.000000e+00> : vector<8xf32>
    %278 = vector.multi_reduction <add>, %277, %cst_115 [1] : vector<8x128xf32> to vector<8xf32>
    %279 = vector.shape_cast %278 : vector<8xf32> to vector<8x1xf32>
    %cst_116 = arith.constant 1.280000e+02 : f32
    %280 = vector.broadcast %cst_116 : f32 to vector<8x1xf32>
    %281 = arith.divf %279, %280 : vector<8x1xf32>
    %282 = vector.broadcast %274 : vector<8x1xf32> to vector<8x128xf32>
    %283 = arith.subf %270, %282 : vector<8x128xf32>
    %cst_117 = arith.constant 9.99999974E-6 : f32
    %284 = vector.broadcast %cst_117 : f32 to vector<8x1xf32>
    %285 = arith.addf %281, %284 : vector<8x1xf32>
    %286 = math.rsqrt %285 : vector<8x1xf32>
    %287 = vector.broadcast %286 : vector<8x1xf32> to vector<8x128xf32>
    %288 = arith.mulf %283, %287 : vector<8x128xf32>
    %c21 = arith.constant 21 : index
    %c0_118 = arith.constant 0 : index
    %289 = vector.load %arg5[%c21, %c0_118] : memref<23x128xf32, #tpu.memory_space<vmem>>, vector<1x128xf32>
    %290 = vector.broadcast %289 : vector<1x128xf32> to vector<8x128xf32>
    %291 = arith.mulf %288, %290 : vector<8x128xf32>
    %c22 = arith.constant 22 : index
    %c0_119 = arith.constant 0 : index
    %292 = vector.load %arg5[%c22, %c0_119] : memref<23x128xf32, #tpu.memory_space<vmem>>, vector<1x128xf32>
    %293 = vector.broadcast %292 : vector<1x128xf32> to vector<8x128xf32>
    %294 = arith.addf %291, %293 : vector<8x128xf32>
    %cst_120 = arith.constant 5.000000e-01 : f32
    %295 = vector.broadcast %cst_120 : f32 to vector<8x128xf32>
    %296 = arith.mulf %295, %294 : vector<8x128xf32>
    %cst_121 = arith.constant 0.707106769 : f32
    %297 = vector.broadcast %cst_121 : f32 to vector<8x128xf32>
    %298 = arith.mulf %294, %297 : vector<8x128xf32>
    %299 = math.erf %298 : vector<8x128xf32>
    %cst_122 = arith.constant 1.000000e+00 : f32
    %300 = vector.broadcast %cst_122 : f32 to vector<8x128xf32>
    %301 = arith.addf %300, %299 : vector<8x128xf32>
    %302 = arith.mulf %296, %301 : vector<8x128xf32>
    %c0_123 = arith.constant 0 : index
    %c0_124 = arith.constant 0 : index
    %303 = vector.load %arg7[%c0_123, %c0_124] : memref<8x128xf32, #tpu.memory_space<vmem>>, vector<8x128xf32>
    tpu.vector_store %arg7[%c0_123, %c0_124], %302 {strides = array<i32>} : memref<8x128xf32, #tpu.memory_space<vmem>>, vector<8x128xf32>,
    return
  }
}

</mosaic_0001>

<llo_original>
// kernel: enhanced_steady_path.1
$region0: #{enhanced_steady_path.1}
  #allocation0 [shape = 'u32[]', space=smem, size = 0x4, offset = 0x4, fixed_abs, tag = 'smem constant byte address 0x4 - core index']
  #allocation1 [shape = 'u32[144,128]{1,0:T(1,128)}', space=vmem, size = 0x12000, scoped, tag = 'internal scratch']
  #allocation2 [shape = 'bf16[8,256]{1,0:T(8,128)(2,1)}', space=vmem, size = 0x1000, scoped, tag = 'scratch operand']
  %s0 = inlined_call_operand.vmem [shape: f32[8,128], index: 0, kind: input, shape index: {}]
  %s1 = inlined_call_operand.hbm [shape: bf16[4,128,128], index: 1, kind: input, shape index: {}]
  %s2 = inlined_call_operand.hbm [shape: bf16[2,128,512], index: 2, kind: input, shape index: {}]
  %s3 = inlined_call_operand.hbm [shape: bf16[2,512,128], index: 3, kind: input, shape index: {}]
  %s4 = inlined_call_operand.hbm [shape: bf16[256,128], index: 4, kind: input, shape index: {}]
  %s5 = inlined_call_operand.vmem [shape: f32[23,128], index: 5, kind: input, shape index: {}]
  %s6 = inlined_call_operand.vmem [shape: f32[2,512], index: 6, kind: input, shape index: {}]
  %s7 = inlined_call_operand.hbm [shape: f32[8,128], index: 7, kind: output, shape index: {}]
  %s8 = sld [smem:[#allocation0]]
  $region54: #{enhanced_steady_path.1} parent=0
    _
  %s10 = ssub.s32 1, %s8
  %s11 = scalar_select 0, %s10, %s8
  $region1: #{enhanced_steady_path.1} parent=0
    #allocation3 [shape = 'u8[131072]{0}', space=vmem, size = 0x20000, scoped, tag = 'input window, operand 1, single buffered']
    #allocation4 [shape = 's32[1]{0}', space=sflag, size = 0x4, scoped, tag = 'scoped memory for enhanced_steady_path.1']
    #allocation5 [shape = 's32[1]{0}', space=sflag, size = 0x4, scoped, tag = 'scoped memory for enhanced_steady_path.1']
    #allocation6 [shape = 'u8[262144]{0}', space=vmem, size = 0x40000, scoped, tag = 'input window, operand 2, single buffered']
    #allocation7 [shape = 's32[1]{0}', space=sflag, size = 0x4, scoped, tag = 'scoped memory for enhanced_steady_path.1']
    #allocation8 [shape = 'u8[262144]{0}', space=vmem, size = 0x40000, scoped, tag = 'input window, operand 3, single buffered']
    #allocation9 [shape = 'u8[65536]{0}', space=vmem, size = 0x10000, scoped, tag = 'input window, operand 4, single buffered']
    #allocation10 [shape = 's32[1]{0}', space=sflag, size = 0x4, scoped, tag = 'scoped memory for enhanced_steady_path.1']
    #allocation11 [shape = 'u8[4096]{0}', space=vmem, size = 0x1000, scoped, tag = 'output window, operand 0, single buffered']
    %12 = vsyncpa [#allocation4], 0
    %13 = vsyncpa [#allocation7], 0
    %14 = vsyncpa [#allocation10], 0
    %15 = vsyncpa [#allocation5], 0
    // Predicated region
    $region2: #{enhanced_steady_path.1} parent=1 // pred_check
      _
    $region3: #{enhanced_steady_path.1} parent=1 // pred_check_branch
      %17 = sbr.rel (0) target = $region5
    $region4: #{enhanced_steady_path.1} parent=1 // pred_region
      _
    $region5: #{enhanced_steady_path.1} parent=1 // pred_fallthru
      _
    // Predicated region
    $region6: #{enhanced_steady_path.1} parent=1 // pred_check
      _
    $region7: #{enhanced_steady_path.1} parent=1 // pred_check_branch
      %19 = sbr.rel (0) target = $region9
    $region8: #{enhanced_steady_path.1} parent=1 // pred_region
      %s21 = ssub.s32 4096, 4096
      %22 = vsyncadd [#allocation4], %s21
      %s23 = sshll.u32 [#allocation3], 4
      %s24 = int_to_ptr.vmem [resolvable:$true] %s23
      %29 = dma.hbm_to_vmem [thread:$0]  %s1, 4096, %s24, [#allocation4], 64, 64, 4
    $region9: #{enhanced_steady_path.1} parent=1 // pred_fallthru
      _
    // Predicated region
    $region10: #{enhanced_steady_path.1} parent=1 // pred_check
      _
    $region11: #{enhanced_steady_path.1} parent=1 // pred_check_branch
      %31 = sbr.rel (0) target = $region13
    $region12: #{enhanced_steady_path.1} parent=1 // pred_region
      %s33 = ssub.s32 8192, 8192
      %34 = vsyncadd [#allocation7], %s33
      %s35 = sshll.u32 [#allocation6], 4
      %s36 = int_to_ptr.vmem [resolvable:$true] %s35
      %41 = dma.hbm_to_vmem [thread:$0]  %s2, 8192, %s36, [#allocation7], 256, 256, 16
    $region13: #{enhanced_steady_path.1} parent=1 // pred_fallthru
      _
    // Predicated region
    $region14: #{enhanced_steady_path.1} parent=1 // pred_check
      _
    $region15: #{enhanced_steady_path.1} parent=1 // pred_check_branch
      %43 = sbr.rel (0) target = $region17
    $region16: #{enhanced_steady_path.1} parent=1 // pred_region
      %s45 = ssub.s32 8192, 8192
      %46 = vsyncadd [#allocation7], %s45
      %s47 = sshll.u32 [#allocation8], 4
      %s48 = int_to_ptr.vmem [resolvable:$true] %s47
      %53 = dma.hbm_to_vmem [thread:$0]  %s3, 8192, %s48, [#allocation7], 64, 64, 4
    $region17: #{enhanced_steady_path.1} parent=1 // pred_fallthru
      _
    // Predicated region
    $region18: #{enhanced_steady_path.1} parent=1 // pred_check
      _
    $region19: #{enhanced_steady_path.1} parent=1 // pred_check_branch
      %55 = sbr.rel (0) target = $region21
    $region20: #{enhanced_steady_path.1} parent=1 // pred_region
      %s57 = ssub.s32 2048, 2048
      %58 = vsyncadd [#allocation10], %s57
      %s59 = sshll.u32 [#allocation9], 4
      %s60 = int_to_ptr.vmem [resolvable:$true] %s59
      %65 = dma.hbm_to_vmem [thread:$0]  %s4, 2048, %s60, [#allocation10], 64, 64, 4
    $region21: #{enhanced_steady_path.1} parent=1 // pred_fallthru
      _
    // Predicated region
    $region22: #{enhanced_steady_path.1} parent=1 // pred_check
      _
    $region23: #{enhanced_steady_path.1} parent=1 // pred_check_branch
      %67 = sbr.rel (0) target = $region25
    $region24: #{enhanced_steady_path.1} parent=1 // pred_region
      _
    $region25: #{enhanced_steady_path.1} parent=1 // pred_fallthru
      _
    // Predicated region
    $region26: #{enhanced_steady_path.1} parent=1 // pred_check
      _
    $region27: #{enhanced_steady_path.1} parent=1 // pred_check_branch
      %69 = sbr.rel (0) target = $region29
    $region28: #{enhanced_steady_path.1} parent=1 // pred_region
      _
    $region29: #{enhanced_steady_path.1} parent=1 // pred_fallthru
      _
    // Predicated region
    $region30: #{enhanced_steady_path.1} parent=1 // pred_check
      _
    $region31: #{enhanced_steady_path.1} parent=1 // pred_check_branch
      %71 = sbr.rel (0) target = $region33
    $region32: #{enhanced_steady_path.1} parent=1 // pred_region
      %72 = dma.done [#allocation4], 4096
    $region33: #{enhanced_steady_path.1} parent=1 // pred_fallthru
      _
    // Predicated region
    $region34: #{enhanced_steady_path.1} parent=1 // pred_check
      _
    $region35: #{enhanced_steady_path.1} parent=1 // pred_check_branch
      %74 = sbr.rel (0) target = $region37
    $region36: #{enhanced_steady_path.1} parent=1 // pred_region
      %75 = dma.done [#allocation7], 8192
    $region37: #{enhanced_steady_path.1} parent=1 // pred_fallthru
      _
    // Predicated region
    $region38: #{enhanced_steady_path.1} parent=1 // pred_check
      _
    $region39: #{enhanced_steady_path.1} parent=1 // pred_check_branch
      %77 = sbr.rel (0) target = $region41
    $region40: #{enhanced_steady_path.1} parent=1 // pred_region
      %78 = dma.done [#allocation7], 8192
    $region41: #{enhanced_steady_path.1} parent=1 // pred_fallthru
      _
    // Predicated region
    $region42: #{enhanced_steady_path.1} parent=1 // pred_check
      _
    $region43: #{enhanced_steady_path.1} parent=1 // pred_check_branch
      %80 = sbr.rel (0) target = $region45
    $region44: #{enhanced_steady_path.1} parent=1 // pred_region
      %81 = dma.done [#allocation10], 2048
    $region45: #{enhanced_steady_path.1} parent=1 // pred_fallthru
      _
    %v83 = vld [vmem:[%s0] sm:$0xff]
    %v84 = vld [vmem:[#allocation3] sm:$0xf]
    %v85 = vld [vmem:[#allocation3 + $0x4] sm:$0xf]
    %v86 = vld [vmem:[#allocation3 + $0x8] sm:$0xf]
    %v87 = vld [vmem:[#allocation3 + $0xc] sm:$0xf]
    %v88 = vld [vmem:[#allocation3 + $0x10] sm:$0xf]
    %v89 = vld [vmem:[#allocation3 + $0x14] sm:$0xf]
    %v90 = vld [vmem:[#allocation3 + $0x18] sm:$0xf]
    %v91 = vld [vmem:[#allocation3 + $0x1c] sm:$0xf]
    %v92 = vld [vmem:[#allocation3 + $0x20] sm:$0xf]
    %v93 = vld [vmem:[#allocation3 + $0x24] sm:$0xf]
    %v94 = vld [vmem:[#allocation3 + $0x28] sm:$0xf]
    %v95 = vld [vmem:[#allocation3 + $0x2c] sm:$0xf]
    %v96 = vld [vmem:[#allocation3 + $0x30] sm:$0xf]
    %v97 = vld [vmem:[#allocation3 + $0x34] sm:$0xf]
    %v98 = vld [vmem:[#allocation3 + $0x38] sm:$0xf]
    %v99 = vld [vmem:[#allocation3 + $0x3c] sm:$0xf]
    %v100 = vld [vmem:[%s5] sm:$0x1]
    %v101 = vpack.c.bf16 %v83, %v83
    %v102 = vlaneseq
    %v103 = vshrl.u32 %v102, 7
    %v104 = vsub.s32 0, %v103
    %v105 = vrot.slane %v100, %v104
    %v122 = vunpack.c.l.b16 %v84
    %v123 = vunpack.c.l.b16 %v85
    %v124 = vunpack.c.l.b16 %v86
    %v125 = vunpack.c.l.b16 %v87
    %v126 = vunpack.c.l.b16 %v88
    %v127 = vunpack.c.l.b16 %v89
    %v128 = vunpack.c.l.b16 %v90
    %v129 = vunpack.c.l.b16 %v91
    %v130 = vunpack.c.l.b16 %v92
    %v131 = vunpack.c.l.b16 %v93
    %v132 = vunpack.c.l.b16 %v94
    %v133 = vunpack.c.l.b16 %v95
    %v134 = vunpack.c.l.b16 %v96
    %v135 = vunpack.c.l.b16 %v97
    %v136 = vunpack.c.l.b16 %v98
    %v137 = vunpack.c.l.b16 %v99
    %v138 = vpack.c.b16 %v123, %v122
    %v139 = vpack.c.b16 %v125, %v124
    %v140 = vpack.c.b16 %v127, %v126
    %v141 = vpack.c.b16 %v129, %v128
    %v142 = vpack.c.b16 %v131, %v130
    %v143 = vpack.c.b16 %v133, %v132
    %v144 = vpack.c.b16 %v135, %v134
    %v145 = vpack.c.b16 %v137, %v136
    %154 = vmatprep.subr.bf16.mxu0 0
    %155 = vmatpush1.bf16.msra.mxu0 %v138
    %156 = vmatprep.subr.bf16.mxu0 0
    %157 = vmatpush1.bf16.msra.mxu0 %v139
    %158 = vmatprep.subr.bf16.mxu0 0
    %159 = vmatpush1.bf16.msra.mxu0 %v140
    %160 = vmatprep.subr.bf16.mxu0 0
    %161 = vmatpush1.bf16.msra.mxu0 %v141
    %162 = vmatprep.subr.bf16.mxu0 0
    %163 = vmatpush1.bf16.msra.mxu0 %v142
    %164 = vmatprep.subr.bf16.mxu0 0
    %165 = vmatpush1.bf16.msra.mxu0 %v143
    %166 = vmatprep.subr.bf16.mxu0 0
    %167 = vmatpush1.bf16.msra.mxu0 %v144
    %168 = vmatprep.subr.bf16.mxu0 0
    %169 = vmatpush1.bf16.msra.mxu0 %v145
    %170 = vmatprep.subr.bf16.mxu0 0
    %171 = vmatpush1.bf16.msra.mxu0 0
    %172 = vmatprep.subr.bf16.mxu0 0
    %173 = vmatpush1.bf16.msra.mxu0 0
    %174 = vmatprep.subr.bf16.mxu0 0
    %175 = vmatpush1.bf16.msra.mxu0 0
    %176 = vmatprep.subr.bf16.mxu0 0
    %177 = vmatpush1.bf16.msra.mxu0 0
    %178 = vmatprep.subr.bf16.mxu0 0
    %179 = vmatpush1.bf16.msra.mxu0 0
    %180 = vmatprep.subr.bf16.mxu0 0
    %181 = vmatpush1.bf16.msra.mxu0 0
    %182 = vmatprep.subr.bf16.mxu0 0
    %183 = vmatpush1.bf16.msra.mxu0 0
    %184 = vmatprep.subr.bf16.mxu0 0
    %185 = vmatpush1.bf16.msra.mxu0 0
    %186 = vmatprep.mubr.bf16.mxu0 0
    %187 = vmatmul.mubr.bf16.gmra.mrb[0].mxu0 %v101
    %v188 = vpop.f32.mrb[0].mxu0
    %v189 = vadd.f32 %v105, %v188
    %v190 = vpop.f32.mrb[0].mxu0
    %v191 = vpop.f32.mrb[0].mxu0
    %v192 = vpop.f32.mrb[0].mxu0
    %193 = vdwg.mxu0
    %194 = vadd.xlane.f32.xlu0 %v189
    %v195 = vpop.xlane.xlu0 %194
    %v196 = vrcp.pop 128.0
    %v197 = vmul.f32 %v195, %v196
    %v198 = vsub.f32 %v189, %v197
    %v199 = vmul.f32 %v198, %v198
    %200 = vadd.xlane.f32.xlu0 %v199
    %v201 = vpop.xlane.xlu0 %200
    %v202 = vmul.f32 %v201, %v196
    %v203 = vadd.f32 %v202, 1e-05
    %v204 = vrsqrt.pop %v203
    %v205 = vmul.f32 %v198, %v204
    %v206 = vld [vmem:[%s5 + $0x1] sm:$0x1]
    %v207 = vlaneseq
    %v208 = vshrl.u32 %v207, 7
    %v209 = vsub.s32 0, %v208
    %v210 = vrot.slane %v206, %v209
    %v211 = vmul.f32 %v205, %v210
    %v212 = vld [vmem:[%s5 + $0x2] sm:$0x1]
    %v213 = vlaneseq
    %v214 = vshrl.u32 %v213, 7
    %v215 = vsub.s32 0, %v214
    %v216 = vrot.slane %v212, %v215
    %v217 = vadd.f32 %v211, %v216
    %v218 = vmul.f32 %v217, 0.5
    %v219 = vmul.f32 %v217, 0.70710677
    %v220 = verf.f32.pop %v219
    %v221 = vadd.f32 %v220, 1.0
    %v222 = vmul.f32 %v218, %v221
    %s223 = scalar_lea.vmem [#allocation3], 64
    %v224 = vld [vmem:[%s223] sm:$0xf]
    %v225 = vld [vmem:[%s223 + $0x4] sm:$0xf]
    %v226 = vld [vmem:[%s223 + $0x8] sm:$0xf]
    %v227 = vld [vmem:[%s223 + $0xc] sm:$0xf]
    %v228 = vld [vmem:[%s223 + $0x10] sm:$0xf]
    %v229 = vld [vmem:[%s223 + $0x14] sm:$0xf]
    %v230 = vld [vmem:[%s223 + $0x18] sm:$0xf]
    %v231 = vld [vmem:[%s223 + $0x1c] sm:$0xf]
    %v232 = vld [vmem:[%s223 + $0x20] sm:$0xf]
    %v233 = vld [vmem:[%s223 + $0x24] sm:$0xf]
    %v234 = vld [vmem:[%s223 + $0x28] sm:$0xf]
    %v235 = vld [vmem:[%s223 + $0x2c] sm:$0xf]
    %v236 = vld [vmem:[%s223 + $0x30] sm:$0xf]
    %v237 = vld [vmem:[%s223 + $0x34] sm:$0xf]
    %v238 = vld [vmem:[%s223 + $0x38] sm:$0xf]
    %v239 = vld [vmem:[%s223 + $0x3c] sm:$0xf]
    %v240 = vld [vmem:[%s5 + $0x3] sm:$0x1]
    %v241 = vpack.c.bf16 %v222, %v222
    %v242 = vlaneseq
    %v243 = vshrl.u32 %v242, 7
    %v244 = vsub.s32 0, %v243
    %v245 = vrot.slane %v240, %v244
    %v262 = vunpack.c.l.b16 %v224
    %v263 = vunpack.c.l.b16 %v225
    %v264 = vunpack.c.l.b16 %v226
    %v265 = vunpack.c.l.b16 %v227
    %v266 = vunpack.c.l.b16 %v228
    %v267 = vunpack.c.l.b16 %v229
    %v268 = vunpack.c.l.b16 %v230
    %v269 = vunpack.c.l.b16 %v231
    %v270 = vunpack.c.l.b16 %v232
    %v271 = vunpack.c.l.b16 %v233
    %v272 = vunpack.c.l.b16 %v234
    %v273 = vunpack.c.l.b16 %v235
    %v274 = vunpack.c.l.b16 %v236
    %v275 = vunpack.c.l.b16 %v237
    %v276 = vunpack.c.l.b16 %v238
    %v277 = vunpack.c.l.b16 %v239
    %v278 = vpack.c.b16 %v263, %v262
    %v279 = vpack.c.b16 %v265, %v264
    %v280 = vpack.c.b16 %v267, %v266
    %v281 = vpack.c.b16 %v269, %v268
    %v282 = vpack.c.b16 %v271, %v270
    %v283 = vpack.c.b16 %v273, %v272
    %v284 = vpack.c.b16 %v275, %v274
    %v285 = vpack.c.b16 %v277, %v276
    %294 = vmatprep.subr.bf16.mxu0 0
    %295 = vmatpush1.bf16.msra.mxu0 %v278
    %296 = vmatprep.subr.bf16.mxu0 0
    %297 = vmatpush1.bf16.msra.mxu0 %v279
    %298 = vmatprep.subr.bf16.mxu0 0
    %299 = vmatpush1.bf16.msra.mxu0 %v280
    %300 = vmatprep.subr.bf16.mxu0 0
    %301 = vmatpush1.bf16.msra.mxu0 %v281
    %302 = vmatprep.subr.bf16.mxu0 0
    %303 = vmatpush1.bf16.msra.mxu0 %v282
    %304 = vmatprep.subr.bf16.mxu0 0
    %305 = vmatpush1.bf16.msra.mxu0 %v283
    %306 = vmatprep.subr.bf16.mxu0 0
    %307 = vmatpush1.bf16.msra.mxu0 %v284
    %308 = vmatprep.subr.bf16.mxu0 0
    %309 = vmatpush1.bf16.msra.mxu0 %v285
    %310 = vmatprep.subr.bf16.mxu0 0
    %311 = vmatpush1.bf16.msra.mxu0 0
    %312 = vmatprep.subr.bf16.mxu0 0
    %313 = vmatpush1.bf16.msra.mxu0 0
    %314 = vmatprep.subr.bf16.mxu0 0
    %315 = vmatpush1.bf16.msra.mxu0 0
    %316 = vmatprep.subr.bf16.mxu0 0
    %317 = vmatpush1.bf16.msra.mxu0 0
    %318 = vmatprep.subr.bf16.mxu0 0
    %319 = vmatpush1.bf16.msra.mxu0 0
    %320 = vmatprep.subr.bf16.mxu0 0
    %321 = vmatpush1.bf16.msra.mxu0 0
    %322 = vmatprep.subr.bf16.mxu0 0
    %323 = vmatpush1.bf16.msra.mxu0 0
    %324 = vmatprep.subr.bf16.mxu0 0
    %325 = vmatpush1.bf16.msra.mxu0 0
    %326 = vmatprep.mubr.bf16.mxu0 0
    %327 = vmatmul.mubr.bf16.gmra.mrb[0].mxu0 %v241
    %v328 = vpop.f32.mrb[0].mxu0
    %v329 = vadd.f32 %v245, %v328
    %v330 = vpop.f32.mrb[0].mxu0
    %v331 = vpop.f32.mrb[0].mxu0
    %v332 = vpop.f32.mrb[0].mxu0
    %333 = vdwg.mxu0
    %334 = vadd.xlane.f32.xlu0 %v329
    %v335 = vpop.xlane.xlu0 %334
    %v336 = vmul.f32 %v335, %v196
    %v337 = vsub.f32 %v329, %v336
    %v338 = vmul.f32 %v337, %v337
    %339 = vadd.xlane.f32.xlu0 %v338
    %v340 = vpop.xlane.xlu0 %339
    %v341 = vmul.f32 %v340, %v196
    %v342 = vadd.f32 %v341, 1e-05
    %v343 = vrsqrt.pop %v342
    %v344 = vmul.f32 %v337, %v343
    %v345 = vld [vmem:[%s5 + $0x4] sm:$0x1]
    %v346 = vlaneseq
    %v347 = vshrl.u32 %v346, 7
    %v348 = vsub.s32 0, %v347
    %v349 = vrot.slane %v345, %v348
    %v350 = vmul.f32 %v344, %v349
    %v351 = vld [vmem:[%s5 + $0x5] sm:$0x1]
    %v352 = vlaneseq
    %v353 = vshrl.u32 %v352, 7
    %v354 = vsub.s32 0, %v353
    %v355 = vrot.slane %v351, %v354
    %v356 = vadd.f32 %v350, %v355
    %v357 = vmul.f32 %v356, 0.5
    %v358 = vmul.f32 %v356, 0.70710677
    %v359 = verf.f32.pop %v358
    %v360 = vadd.f32 %v359, 1.0
    %v361 = vmul.f32 %v357, %v360
    %362 = vadd.xlane.f32.xlu0 %v222
    %v363 = vpop.xlane.xlu0 %362
    %v364 = vmul.f32 %v363, %v196
    %v365 = vsub.f32 %v222, %v364
    %v366 = vmul.f32 %v365, %v365
    %367 = vadd.xlane.f32.xlu0 %v366
    %v368 = vpop.xlane.xlu0 %367
    %v369 = vmul.f32 %v368, %v196
    %v370 = vadd.f32 %v369, 1e-05
    %v371 = vrsqrt.pop %v370
    %v372 = vmul.f32 %v365, %v371
    %v373 = vld [vmem:[%s5 + $0x6] sm:$0x1]
    %v374 = vlaneseq
    %v375 = vshrl.u32 %v374, 7
    %v376 = vsub.s32 0, %v375
    %v377 = vrot.slane %v373, %v376
    %v378 = vmul.f32 %v372, %v377
    %v379 = vld [vmem:[%s5 + $0x7] sm:$0x1]
    %v380 = vlaneseq
    %v381 = vshrl.u32 %v380, 7
    %v382 = vsub.s32 0, %v381
    %v383 = vrot.slane %v379, %v382
    %v384 = vadd.f32 %v378, %v383
    %s385 = scalar_lea.vmem [#allocation3], 128
    %v386 = vld [vmem:[%s385] sm:$0xf]
    %v387 = vld [vmem:[%s385 + $0x4] sm:$0xf]
    %v388 = vld [vmem:[%s385 + $0x8] sm:$0xf]
    %v389 = vld [vmem:[%s385 + $0xc] sm:$0xf]
    %v390 = vld [vmem:[%s385 + $0x10] sm:$0xf]
    %v391 = vld [vmem:[%s385 + $0x14] sm:$0xf]
    %v392 = vld [vmem:[%s385 + $0x18] sm:$0xf]
    %v393 = vld [vmem:[%s385 + $0x1c] sm:$0xf]
    %v394 = vld [vmem:[%s385 + $0x20] sm:$0xf]
    %v395 = vld [vmem:[%s385 + $0x24] sm:$0xf]
    %v396 = vld [vmem:[%s385 + $0x28] sm:$0xf]
    %v397 = vld [vmem:[%s385 + $0x2c] sm:$0xf]
    %v398 = vld [vmem:[%s385 + $0x30] sm:$0xf]
    %v399 = vld [vmem:[%s385 + $0x34] sm:$0xf]
    %v400 = vld [vmem:[%s385 + $0x38] sm:$0xf]
    %v401 = vld [vmem:[%s385 + $0x3c] sm:$0xf]
    %v402 = vld [vmem:[%s5 + $0x8] sm:$0x1]
    %v403 = vpack.c.bf16 %v384, %v384
    %v404 = vlaneseq
    %v405 = vshrl.u32 %v404, 7
    %v406 = vsub.s32 0, %v405
    %v407 = vrot.slane %v402, %v406
    %v424 = vunpack.c.l.b16 %v386
    %v425 = vunpack.c.l.b16 %v387
    %v426 = vunpack.c.l.b16 %v388
    %v427 = vunpack.c.l.b16 %v389
    %v428 = vunpack.c.l.b16 %v390
    %v429 = vunpack.c.l.b16 %v391
    %v430 = vunpack.c.l.b16 %v392
    %v431 = vunpack.c.l.b16 %v393
    %v432 = vunpack.c.l.b16 %v394
    %v433 = vunpack.c.l.b16 %v395
    %v434 = vunpack.c.l.b16 %v396
    %v435 = vunpack.c.l.b16 %v397
    %v436 = vunpack.c.l.b16 %v398
    %v437 = vunpack.c.l.b16 %v399
    %v438 = vunpack.c.l.b16 %v400
    %v439 = vunpack.c.l.b16 %v401
    %v440 = vpack.c.b16 %v425, %v424
    %v441 = vpack.c.b16 %v427, %v426
    %v442 = vpack.c.b16 %v429, %v428
    %v443 = vpack.c.b16 %v431, %v430
    %v444 = vpack.c.b16 %v433, %v432
    %v445 = vpack.c.b16 %v435, %v434
    %v446 = vpack.c.b16 %v437, %v436
    %v447 = vpack.c.b16 %v439, %v438
    %456 = vmatprep.subr.bf16.mxu0 0
    %457 = vmatpush1.bf16.msra.mxu0 %v440
    %458 = vmatprep.subr.bf16.mxu0 0
    %459 = vmatpush1.bf16.msra.mxu0 %v441
    %460 = vmatprep.subr.bf16.mxu0 0
    %461 = vmatpush1.bf16.msra.mxu0 %v442
    %462 = vmatprep.subr.bf16.mxu0 0
    %463 = vmatpush1.bf16.msra.mxu0 %v443
    %464 = vmatprep.subr.bf16.mxu0 0
    %465 = vmatpush1.bf16.msra.mxu0 %v444
    %466 = vmatprep.subr.bf16.mxu0 0
    %467 = vmatpush1.bf16.msra.mxu0 %v445
    %468 = vmatprep.subr.bf16.mxu0 0
    %469 = vmatpush1.bf16.msra.mxu0 %v446
    %470 = vmatprep.subr.bf16.mxu0 0
    %471 = vmatpush1.bf16.msra.mxu0 %v447
    %472 = vmatprep.subr.bf16.mxu0 0
    %473 = vmatpush1.bf16.msra.mxu0 0
    %474 = vmatprep.subr.bf16.mxu0 0
    %475 = vmatpush1.bf16.msra.mxu0 0
    %476 = vmatprep.subr.bf16.mxu0 0
    %477 = vmatpush1.bf16.msra.mxu0 0
    %478 = vmatprep.subr.bf16.mxu0 0
    %479 = vmatpush1.bf16.msra.mxu0 0
    %480 = vmatprep.subr.bf16.mxu0 0
    %481 = vmatpush1.bf16.msra.mxu0 0
    %482 = vmatprep.subr.bf16.mxu0 0
    %483 = vmatpush1.bf16.msra.mxu0 0
    %484 = vmatprep.subr.bf16.mxu0 0
    %485 = vmatpush1.bf16.msra.mxu0 0
    %486 = vmatprep.subr.bf16.mxu0 0
    %487 = vmatpush1.bf16.msra.mxu0 0
    %488 = vmatprep.mubr.bf16.mxu0 0
    %489 = vmatmul.mubr.bf16.gmra.mrb[0].mxu0 %v403
    %v490 = vpop.f32.mrb[0].mxu0
    %v491 = vadd.f32 %v407, %v490
    %v492 = vpop.f32.mrb[0].mxu0
    %v493 = vpop.f32.mrb[0].mxu0
    %v494 = vpop.f32.mrb[0].mxu0
    %495 = vdwg.mxu0
    %v496 = vadd.f32 %v222, %v491
    %497 = vadd.xlane.f32.xlu0 %v496
    %v498 = vpop.xlane.xlu0 %497
    %v499 = vmul.f32 %v498, %v196
    %v500 = vsub.f32 %v496, %v499
    %v501 = vmul.f32 %v500, %v500
    %502 = vadd.xlane.f32.xlu0 %v501
    %v503 = vpop.xlane.xlu0 %502
    %v504 = vmul.f32 %v503, %v196
    %v505 = vadd.f32 %v504, 1e-05
    %v506 = vrsqrt.pop %v505
    %v507 = vmul.f32 %v500, %v506
    %v508 = vld [vmem:[%s5 + $0x9] sm:$0x1]
    %v509 = vlaneseq
    %v510 = vshrl.u32 %v509, 7
    %v511 = vsub.s32 0, %v510
    %v512 = vrot.slane %v508, %v511
    %v513 = vmul.f32 %v507, %v512
    %v514 = vld [vmem:[%s5 + $0xa] sm:$0x1]
    %v515 = vlaneseq
    %v516 = vshrl.u32 %v515, 7
    %v517 = vsub.s32 0, %v516
    %v518 = vrot.slane %v514, %v517
    %v519 = vadd.f32 %v513, %v518
    %v520 = vld [vmem:[#allocation6] sm:$0xff]
    %v521 = vld [vmem:[#allocation6 + $0x8] sm:$0xff]
    %v522 = vld [vmem:[#allocation6 + $0x10] sm:$0xff]
    %v523 = vld [vmem:[#allocation6 + $0x18] sm:$0xff]
    %v524 = vld [vmem:[#allocation6 + $0x20] sm:$0xff]
    %v525 = vld [vmem:[#allocation6 + $0x28] sm:$0xff]
    %v526 = vld [vmem:[#allocation6 + $0x30] sm:$0xff]
    %v527 = vld [vmem:[#allocation6 + $0x38] sm:$0xff]
    %v528 = vld [vmem:[#allocation6 + $0x40] sm:$0xff]
    %v529 = vld [vmem:[#allocation6 + $0x48] sm:$0xff]
    %v530 = vld [vmem:[#allocation6 + $0x50] sm:$0xff]
    %v531 = vld [vmem:[#allocation6 + $0x58] sm:$0xff]
    %v532 = vld [vmem:[#allocation6 + $0x60] sm:$0xff]
    %v533 = vld [vmem:[#allocation6 + $0x68] sm:$0xff]
    %v534 = vld [vmem:[#allocation6 + $0x70] sm:$0xff]
    %v535 = vld [vmem:[#allocation6 + $0x78] sm:$0xff]
    %v536 = vld [vmem:[#allocation6 + $0x80] sm:$0xff]
    %v537 = vld [vmem:[#allocation6 + $0x88] sm:$0xff]
    %v538 = vld [vmem:[#allocation6 + $0x90] sm:$0xff]
    %v539 = vld [vmem:[#allocation6 + $0x98] sm:$0xff]
    %v540 = vld [vmem:[#allocation6 + $0xa0] sm:$0xff]
    %v541 = vld [vmem:[#allocation6 + $0xa8] sm:$0xff]
    %v542 = vld [vmem:[#allocation6 + $0xb0] sm:$0xff]
    %v543 = vld [vmem:[#allocation6 + $0xb8] sm:$0xff]
    %v544 = vld [vmem:[#allocation6 + $0xc0] sm:$0xff]
    %v545 = vld [vmem:[#allocation6 + $0xc8] sm:$0xff]
    %v546 = vld [vmem:[#allocation6 + $0xd0] sm:$0xff]
    %v547 = vld [vmem:[#allocation6 + $0xd8] sm:$0xff]
    %v548 = vld [vmem:[#allocation6 + $0xe0] sm:$0xff]
    %v549 = vld [vmem:[#allocation6 + $0xe8] sm:$0xff]
    %v550 = vld [vmem:[#allocation6 + $0xf0] sm:$0xff]
    %v551 = vld [vmem:[#allocation6 + $0xf8] sm:$0xff]
    %v552 = vld [vmem:[%s6] ss:$2 sm:$0xf]
    %v553 = vpack.c.bf16 %v519, %v519
    %v555 = vlaneseq
    %v556 = vshrl.u32 %v555, 7
    %v557 = vsub.s32 0, %v556
    %v558 = vrot.slane %v552, %v557
    %v559 = vlaneseq
    %v560 = vshrl.u32 %v559, 7
    %v561 = vsub.s32 1, %v560
    %v562 = vrot.slane %v552, %v561
    %v563 = vlaneseq
    %v564 = vshrl.u32 %v563, 7
    %v565 = vsub.s32 2, %v564
    %v566 = vrot.slane %v552, %v565
    %v567 = vlaneseq
    %v568 = vshrl.u32 %v567, 7
    %v569 = vsub.s32 3, %v568
    %v570 = vrot.slane %v552, %v569
    %v607 = vunpack.c.l.b16 %v520
    %v608 = vunpack.c.h.b16 %v520
    %v609 = vunpack.c.l.b16 %v521
    %v610 = vunpack.c.h.b16 %v521
    %v611 = vunpack.c.l.b16 %v522
    %v612 = vunpack.c.h.b16 %v522
    %v613 = vunpack.c.l.b16 %v523
    %v614 = vunpack.c.h.b16 %v523
    %v615 = vunpack.c.l.b16 %v524
    %v616 = vunpack.c.h.b16 %v524
    %v617 = vunpack.c.l.b16 %v525
    %v618 = vunpack.c.h.b16 %v525
    %v619 = vunpack.c.l.b16 %v526
    %v620 = vunpack.c.h.b16 %v526
    %v621 = vunpack.c.l.b16 %v527
    %v622 = vunpack.c.h.b16 %v527
    %v623 = vunpack.c.l.b16 %v528
    %v624 = vunpack.c.h.b16 %v528
    %v625 = vunpack.c.l.b16 %v529
    %v626 = vunpack.c.h.b16 %v529
    %v627 = vunpack.c.l.b16 %v530
    %v628 = vunpack.c.h.b16 %v530
    %v629 = vunpack.c.l.b16 %v531
    %v630 = vunpack.c.h.b16 %v531
    %v631 = vunpack.c.l.b16 %v532
    %v632 = vunpack.c.h.b16 %v532
    %v633 = vunpack.c.l.b16 %v533
    %v634 = vunpack.c.h.b16 %v533
    %v635 = vunpack.c.l.b16 %v534
    %v636 = vunpack.c.h.b16 %v534
    %v637 = vunpack.c.l.b16 %v535
    %v638 = vunpack.c.h.b16 %v535
    %v639 = vunpack.c.l.b16 %v536
    %v640 = vunpack.c.h.b16 %v536
    %v641 = vunpack.c.l.b16 %v537
    %v642 = vunpack.c.h.b16 %v537
    %v643 = vunpack.c.l.b16 %v538
    %v644 = vunpack.c.h.b16 %v538
    %v645 = vunpack.c.l.b16 %v539
    %v646 = vunpack.c.h.b16 %v539
    %v647 = vunpack.c.l.b16 %v540
    %v648 = vunpack.c.h.b16 %v540
    %v649 = vunpack.c.l.b16 %v541
    %v650 = vunpack.c.h.b16 %v541
    %v651 = vunpack.c.l.b16 %v542
    %v652 = vunpack.c.h.b16 %v542
    %v653 = vunpack.c.l.b16 %v543
    %v654 = vunpack.c.h.b16 %v543
    %v655 = vunpack.c.l.b16 %v544
    %v656 = vunpack.c.h.b16 %v544
    %v657 = vunpack.c.l.b16 %v545
    %v658 = vunpack.c.h.b16 %v545
    %v659 = vunpack.c.l.b16 %v546
    %v660 = vunpack.c.h.b16 %v546
    %v661 = vunpack.c.l.b16 %v547
    %v662 = vunpack.c.h.b16 %v547
    %v663 = vunpack.c.l.b16 %v548
    %v664 = vunpack.c.h.b16 %v548
    %v665 = vunpack.c.l.b16 %v549
    %v666 = vunpack.c.h.b16 %v549
    %v667 = vunpack.c.l.b16 %v550
    %v668 = vunpack.c.h.b16 %v550
    %v669 = vunpack.c.l.b16 %v551
    %v670 = vunpack.c.h.b16 %v551
    %v671 = vpack.c.b16 %v611, %v607
    %v672 = vpack.c.b16 %v612, %v608
    %v673 = vpack.c.b16 %v613, %v609
    %v674 = vpack.c.b16 %v614, %v610
    %v675 = vpack.c.b16 %v619, %v615
    %v676 = vpack.c.b16 %v620, %v616
    %v677 = vpack.c.b16 %v621, %v617
    %v678 = vpack.c.b16 %v622, %v618
    %v679 = vpack.c.b16 %v627, %v623
    %v680 = vpack.c.b16 %v628, %v624
    %v681 = vpack.c.b16 %v629, %v625
    %v682 = vpack.c.b16 %v630, %v626
    %v683 = vpack.c.b16 %v635, %v631
    %v684 = vpack.c.b16 %v636, %v632
    %v685 = vpack.c.b16 %v637, %v633
    %v686 = vpack.c.b16 %v638, %v634
    %v687 = vpack.c.b16 %v643, %v639
    %v688 = vpack.c.b16 %v644, %v640
    %v689 = vpack.c.b16 %v645, %v641
    %v690 = vpack.c.b16 %v646, %v642
    %v691 = vpack.c.b16 %v651, %v647
    %v692 = vpack.c.b16 %v652, %v648
    %v693 = vpack.c.b16 %v653, %v649
    %v694 = vpack.c.b16 %v654, %v650
    %v695 = vpack.c.b16 %v659, %v655
    %v696 = vpack.c.b16 %v660, %v656
    %v697 = vpack.c.b16 %v661, %v657
    %v698 = vpack.c.b16 %v662, %v658
    %v699 = vpack.c.b16 %v667, %v663
    %v700 = vpack.c.b16 %v668, %v664
    %v701 = vpack.c.b16 %v669, %v665
    %v702 = vpack.c.b16 %v670, %v666
    %735 = vmatprep.subr.bf16.mxu0 %v672
    %736 = vmatpush1.bf16.msra.mxu0 %v671
    %737 = vmatprep.subr.bf16.mxu0 %v676
    %738 = vmatpush1.bf16.msra.mxu0 %v675
    %739 = vmatprep.subr.bf16.mxu0 %v680
    %740 = vmatpush1.bf16.msra.mxu0 %v679
    %741 = vmatprep.subr.bf16.mxu0 %v684
    %742 = vmatpush1.bf16.msra.mxu0 %v683
    %743 = vmatprep.subr.bf16.mxu0 %v688
    %744 = vmatpush1.bf16.msra.mxu0 %v687
    %745 = vmatprep.subr.bf16.mxu0 %v692
    %746 = vmatpush1.bf16.msra.mxu0 %v691
    %747 = vmatprep.subr.bf16.mxu0 %v696
    %748 = vmatpush1.bf16.msra.mxu0 %v695
    %749 = vmatprep.subr.bf16.mxu0 %v700
    %750 = vmatpush1.bf16.msra.mxu0 %v699
    %751 = vmatprep.subr.bf16.mxu0 0
    %752 = vmatpush1.bf16.msra.mxu0 0
    %753 = vmatprep.subr.bf16.mxu0 0
    %754 = vmatpush1.bf16.msra.mxu0 0
    %755 = vmatprep.subr.bf16.mxu0 0
    %756 = vmatpush1.bf16.msra.mxu0 0
    %757 = vmatprep.subr.bf16.mxu0 0
    %758 = vmatpush1.bf16.msra.mxu0 0
    %759 = vmatprep.subr.bf16.mxu0 0
    %760 = vmatpush1.bf16.msra.mxu0 0
    %761 = vmatprep.subr.bf16.mxu0 0
    %762 = vmatpush1.bf16.msra.mxu0 0
    %763 = vmatprep.subr.bf16.mxu0 0
    %764 = vmatpush1.bf16.msra.mxu0 0
    %765 = vmatprep.subr.bf16.mxu0 0
    %766 = vmatpush1.bf16.msra.mxu0 0
    %767 = vmatprep.mubr.bf16.mxu0 0
    %768 = vmatmul.mubr.bf16.gmra.mrb[0].mxu0 %v553
    %v769 = vpop.f32.mrb[0].mxu0
    %v770 = vadd.f32 %v558, %v769
    %v771 = vpop.f32.mrb[0].mxu0
    %v772 = vadd.f32 %v562, %v771
    %v773 = vpop.f32.mrb[0].mxu0
    %v774 = vpop.f32.mrb[0].mxu0
    %775 = vdwg.mxu0
    %776 = vmatprep.subr.bf16.mxu0 %v674
    %777 = vmatpush1.bf16.msra.mxu0 %v673
    %778 = vmatprep.subr.bf16.mxu0 %v678
    %779 = vmatpush1.bf16.msra.mxu0 %v677
    %780 = vmatprep.subr.bf16.mxu0 %v682
    %781 = vmatpush1.bf16.msra.mxu0 %v681
    %782 = vmatprep.subr.bf16.mxu0 %v686
    %783 = vmatpush1.bf16.msra.mxu0 %v685
    %784 = vmatprep.subr.bf16.mxu0 %v690
    %785 = vmatpush1.bf16.msra.mxu0 %v689
    %786 = vmatprep.subr.bf16.mxu0 %v694
    %787 = vmatpush1.bf16.msra.mxu0 %v693
    %788 = vmatprep.subr.bf16.mxu0 %v698
    %789 = vmatpush1.bf16.msra.mxu0 %v697
    %790 = vmatprep.subr.bf16.mxu0 %v702
    %791 = vmatpush1.bf16.msra.mxu0 %v701
    %792 = vmatprep.subr.bf16.mxu0 0
    %793 = vmatpush1.bf16.msra.mxu0 0
    %794 = vmatprep.subr.bf16.mxu0 0
    %795 = vmatpush1.bf16.msra.mxu0 0
    %796 = vmatprep.subr.bf16.mxu0 0
    %797 = vmatpush1.bf16.msra.mxu0 0
    %798 = vmatprep.subr.bf16.mxu0 0
    %799 = vmatpush1.bf16.msra.mxu0 0
    %800 = vmatprep.subr.bf16.mxu0 0
    %801 = vmatpush1.bf16.msra.mxu0 0
    %802 = vmatprep.subr.bf16.mxu0 0
    %803 = vmatpush1.bf16.msra.mxu0 0
    %804 = vmatprep.subr.bf16.mxu0 0
    %805 = vmatpush1.bf16.msra.mxu0 0
    %806 = vmatprep.subr.bf16.mxu0 0
    %807 = vmatpush1.bf16.msra.mxu0 0
    %808 = vmatprep.mubr.bf16.mxu0 0
    %809 = vmatmul.mubr.bf16.gmra.mrb[0].mxu0 %v553
    %v810 = vpop.f32.mrb[0].mxu0
    %v811 = vadd.f32 %v566, %v810
    %v812 = vpop.f32.mrb[0].mxu0
    %v813 = vadd.f32 %v570, %v812
    %v814 = vpop.f32.mrb[0].mxu0
    %v815 = vpop.f32.mrb[0].mxu0
    %816 = vdwg.mxu0
    %v817 = vmul.f32 %v770, 0.5
    %v818 = vmul.f32 %v772, 0.5
    %v819 = vmul.f32 %v811, 0.5
    %v820 = vmul.f32 %v813, 0.5
    %v821 = vmul.f32 %v770, 0.70710677
    %v822 = vmul.f32 %v772, 0.70710677
    %v823 = vmul.f32 %v811, 0.70710677
    %v824 = vmul.f32 %v813, 0.70710677
    %v825 = verf.f32.pop %v821
    %v826 = verf.f32.pop %v822
    %v827 = verf.f32.pop %v823
    %v828 = verf.f32.pop %v824
    %v829 = vadd.f32 %v825, 1.0
    %v830 = vadd.f32 %v826, 1.0
    %v831 = vadd.f32 %v827, 1.0
    %v832 = vadd.f32 %v828, 1.0
    %v833 = vmul.f32 %v817, %v829
    %v834 = vmul.f32 %v818, %v830
    %v835 = vmul.f32 %v819, %v831
    %v836 = vmul.f32 %v820, %v832
    %v837 = vld [vmem:[#allocation8] sm:$0xf]
    %v838 = vld [vmem:[#allocation8 + $0x4] sm:$0xf]
    %v839 = vld [vmem:[#allocation8 + $0x8] sm:$0xf]
    %v840 = vld [vmem:[#allocation8 + $0xc] sm:$0xf]
    %v841 = vld [vmem:[#allocation8 + $0x10] sm:$0xf]
    %v842 = vld [vmem:[#allocation8 + $0x14] sm:$0xf]
    %v843 = vld [vmem:[#allocation8 + $0x18] sm:$0xf]
    %v844 = vld [vmem:[#allocation8 + $0x1c] sm:$0xf]
    %v845 = vld [vmem:[#allocation8 + $0x20] sm:$0xf]
    %v846 = vld [vmem:[#allocation8 + $0x24] sm:$0xf]
    %v847 = vld [vmem:[#allocation8 + $0x28] sm:$0xf]
    %v848 = vld [vmem:[#allocation8 + $0x2c] sm:$0xf]
    %v849 = vld [vmem:[#allocation8 + $0x30] sm:$0xf]
    %v850 = vld [vmem:[#allocation8 + $0x34] sm:$0xf]
    %v851 = vld [vmem:[#allocation8 + $0x38] sm:$0xf]
    %v852 = vld [vmem:[#allocation8 + $0x3c] sm:$0xf]
    %v853 = vld [vmem:[#allocation8 + $0x40] sm:$0xf]
    %v854 = vld [vmem:[#allocation8 + $0x44] sm:$0xf]
    %v855 = vld [vmem:[#allocation8 + $0x48] sm:$0xf]
    %v856 = vld [vmem:[#allocation8 + $0x4c] sm:$0xf]
    %v857 = vld [vmem:[#allocation8 + $0x50] sm:$0xf]
    %v858 = vld [vmem:[#allocation8 + $0x54] sm:$0xf]
    %v859 = vld [vmem:[#allocation8 + $0x58] sm:$0xf]
    %v860 = vld [vmem:[#allocation8 + $0x5c] sm:$0xf]
    %v861 = vld [vmem:[#allocation8 + $0x60] sm:$0xf]
    %v862 = vld [vmem:[#allocation8 + $0x64] sm:$0xf]
    %v863 = vld [vmem:[#allocation8 + $0x68] sm:$0xf]
    %v864 = vld [vmem:[#allocation8 + $0x6c] sm:$0xf]
    %v865 = vld [vmem:[#allocation8 + $0x70] sm:$0xf]
    %v866 = vld [vmem:[#allocation8 + $0x74] sm:$0xf]
    %v867 = vld [vmem:[#allocation8 + $0x78] sm:$0xf]
    %v868 = vld [vmem:[#allocation8 + $0x7c] sm:$0xf]
    %v869 = vld [vmem:[#allocation8 + $0x80] sm:$0xf]
    %v870 = vld [vmem:[#allocation8 + $0x84] sm:$0xf]
    %v871 = vld [vmem:[#allocation8 + $0x88] sm:$0xf]
    %v872 = vld [vmem:[#allocation8 + $0x8c] sm:$0xf]
    %v873 = vld [vmem:[#allocation8 + $0x90] sm:$0xf]
    %v874 = vld [vmem:[#allocation8 + $0x94] sm:$0xf]
    %v875 = vld [vmem:[#allocation8 + $0x98] sm:$0xf]
    %v876 = vld [vmem:[#allocation8 + $0x9c] sm:$0xf]
    %v877 = vld [vmem:[#allocation8 + $0xa0] sm:$0xf]
    %v878 = vld [vmem:[#allocation8 + $0xa4] sm:$0xf]
    %v879 = vld [vmem:[#allocation8 + $0xa8] sm:$0xf]
    %v880 = vld [vmem:[#allocation8 + $0xac] sm:$0xf]
    %v881 = vld [vmem:[#allocation8 + $0xb0] sm:$0xf]
    %v882 = vld [vmem:[#allocation8 + $0xb4] sm:$0xf]
    %v883 = vld [vmem:[#allocation8 + $0xb8] sm:$0xf]
    %v884 = vld [vmem:[#allocation8 + $0xbc] sm:$0xf]
    %v885 = vld [vmem:[#allocation8 + $0xc0] sm:$0xf]
    %v886 = vld [vmem:[#allocation8 + $0xc4] sm:$0xf]
    %v887 = vld [vmem:[#allocation8 + $0xc8] sm:$0xf]
    %v888 = vld [vmem:[#allocation8 + $0xcc] sm:$0xf]
    %v889 = vld [vmem:[#allocation8 + $0xd0] sm:$0xf]
    %v890 = vld [vmem:[#allocation8 + $0xd4] sm:$0xf]
    %v891 = vld [vmem:[#allocation8 + $0xd8] sm:$0xf]
    %v892 = vld [vmem:[#allocation8 + $0xdc] sm:$0xf]
    %v893 = vld [vmem:[#allocation8 + $0xe0] sm:$0xf]
    %v894 = vld [vmem:[#allocation8 + $0xe4] sm:$0xf]
    %v895 = vld [vmem:[#allocation8 + $0xe8] sm:$0xf]
    %v896 = vld [vmem:[#allocation8 + $0xec] sm:$0xf]
    %v897 = vld [vmem:[#allocation8 + $0xf0] sm:$0xf]
    %v898 = vld [vmem:[#allocation8 + $0xf4] sm:$0xf]
    %v899 = vld [vmem:[#allocation8 + $0xf8] sm:$0xf]
    %v900 = vld [vmem:[#allocation8 + $0xfc] sm:$0xf]
    %v901 = vld [vmem:[%s5 + $0xb] sm:$0x1]
    %v902 = vpack.c.bf16 %v833, %v833
    %v903 = vpack.c.bf16 %v834, %v834
    %v904 = vpack.c.bf16 %v835, %v835
    %v905 = vpack.c.bf16 %v836, %v836
    %v906 = vlaneseq
    %v907 = vshrl.u32 %v906, 7
    %v908 = vsub.s32 0, %v907
    %v909 = vrot.slane %v901, %v908
    %v974 = vunpack.c.l.b16 %v837
    %v975 = vunpack.c.l.b16 %v838
    %v976 = vunpack.c.l.b16 %v839
    %v977 = vunpack.c.l.b16 %v840
    %v978 = vunpack.c.l.b16 %v841
    %v979 = vunpack.c.l.b16 %v842
    %v980 = vunpack.c.l.b16 %v843
    %v981 = vunpack.c.l.b16 %v844
    %v982 = vunpack.c.l.b16 %v845
    %v983 = vunpack.c.l.b16 %v846
    %v984 = vunpack.c.l.b16 %v847
    %v985 = vunpack.c.l.b16 %v848
    %v986 = vunpack.c.l.b16 %v849
    %v987 = vunpack.c.l.b16 %v850
    %v988 = vunpack.c.l.b16 %v851
    %v989 = vunpack.c.l.b16 %v852
    %v990 = vunpack.c.l.b16 %v853
    %v991 = vunpack.c.l.b16 %v854
    %v992 = vunpack.c.l.b16 %v855
    %v993 = vunpack.c.l.b16 %v856
    %v994 = vunpack.c.l.b16 %v857
    %v995 = vunpack.c.l.b16 %v858
    %v996 = vunpack.c.l.b16 %v859
    %v997 = vunpack.c.l.b16 %v860
    %v998 = vunpack.c.l.b16 %v861
    %v999 = vunpack.c.l.b16 %v862
    %v1000 = vunpack.c.l.b16 %v863
    %v1001 = vunpack.c.l.b16 %v864
    %v1002 = vunpack.c.l.b16 %v865
    %v1003 = vunpack.c.l.b16 %v866
    %v1004 = vunpack.c.l.b16 %v867
    %v1005 = vunpack.c.l.b16 %v868
    %v1006 = vunpack.c.l.b16 %v869
    %v1007 = vunpack.c.l.b16 %v870
    %v1008 = vunpack.c.l.b16 %v871
    %v1009 = vunpack.c.l.b16 %v872
    %v1010 = vunpack.c.l.b16 %v873
    %v1011 = vunpack.c.l.b16 %v874
    %v1012 = vunpack.c.l.b16 %v875
    %v1013 = vunpack.c.l.b16 %v876
    %v1014 = vunpack.c.l.b16 %v877
    %v1015 = vunpack.c.l.b16 %v878
    %v1016 = vunpack.c.l.b16 %v879
    %v1017 = vunpack.c.l.b16 %v880
    %v1018 = vunpack.c.l.b16 %v881
    %v1019 = vunpack.c.l.b16 %v882
    %v1020 = vunpack.c.l.b16 %v883
    %v1021 = vunpack.c.l.b16 %v884
    %v1022 = vunpack.c.l.b16 %v885
    %v1023 = vunpack.c.l.b16 %v886
    %v1024 = vunpack.c.l.b16 %v887
    %v1025 = vunpack.c.l.b16 %v888
    %v1026 = vunpack.c.l.b16 %v889
    %v1027 = vunpack.c.l.b16 %v890
    %v1028 = vunpack.c.l.b16 %v891
    %v1029 = vunpack.c.l.b16 %v892
    %v1030 = vunpack.c.l.b16 %v893
    %v1031 = vunpack.c.l.b16 %v894
    %v1032 = vunpack.c.l.b16 %v895
    %v1033 = vunpack.c.l.b16 %v896
    %v1034 = vunpack.c.l.b16 %v897
    %v1035 = vunpack.c.l.b16 %v898
    %v1036 = vunpack.c.l.b16 %v899
    %v1037 = vunpack.c.l.b16 %v900
    %v1038 = vpack.c.b16 %v975, %v974
    %v1039 = vpack.c.b16 %v977, %v976
    %v1040 = vpack.c.b16 %v979, %v978
    %v1041 = vpack.c.b16 %v981, %v980
    %v1042 = vpack.c.b16 %v983, %v982
    %v1043 = vpack.c.b16 %v985, %v984
    %v1044 = vpack.c.b16 %v987, %v986
    %v1045 = vpack.c.b16 %v989, %v988
    %v1046 = vpack.c.b16 %v991, %v990
    %v1047 = vpack.c.b16 %v993, %v992
    %v1048 = vpack.c.b16 %v995, %v994
    %v1049 = vpack.c.b16 %v997, %v996
    %v1050 = vpack.c.b16 %v999, %v998
    %v1051 = vpack.c.b16 %v1001, %v1000
    %v1052 = vpack.c.b16 %v1003, %v1002
    %v1053 = vpack.c.b16 %v1005, %v1004
    %v1054 = vpack.c.b16 %v1007, %v1006
    %v1055 = vpack.c.b16 %v1009, %v1008
    %v1056 = vpack.c.b16 %v1011, %v1010
    %v1057 = vpack.c.b16 %v1013, %v1012
    %v1058 = vpack.c.b16 %v1015, %v1014
    %v1059 = vpack.c.b16 %v1017, %v1016
    %v1060 = vpack.c.b16 %v1019, %v1018
    %v1061 = vpack.c.b16 %v1021, %v1020
    %v1062 = vpack.c.b16 %v1023, %v1022
    %v1063 = vpack.c.b16 %v1025, %v1024
    %v1064 = vpack.c.b16 %v1027, %v1026
    %v1065 = vpack.c.b16 %v1029, %v1028
    %v1066 = vpack.c.b16 %v1031, %v1030
    %v1067 = vpack.c.b16 %v1033, %v1032
    %v1068 = vpack.c.b16 %v1035, %v1034
    %v1069 = vpack.c.b16 %v1037, %v1036
    %1102 = vmatprep.subr.bf16.mxu0 0
    %1103 = vmatpush1.bf16.msra.mxu0 %v1038
    %1104 = vmatprep.subr.bf16.mxu0 0
    %1105 = vmatpush1.bf16.msra.mxu0 %v1039
    %1106 = vmatprep.subr.bf16.mxu0 0
    %1107 = vmatpush1.bf16.msra.mxu0 %v1040
    %1108 = vmatprep.subr.bf16.mxu0 0
    %1109 = vmatpush1.bf16.msra.mxu0 %v1041
    %1110 = vmatprep.subr.bf16.mxu0 0
    %1111 = vmatpush1.bf16.msra.mxu0 %v1042
    %1112 = vmatprep.subr.bf16.mxu0 0
    %1113 = vmatpush1.bf16.msra.mxu0 %v1043
    %1114 = vmatprep.subr.bf16.mxu0 0
    %1115 = vmatpush1.bf16.msra.mxu0 %v1044
    %1116 = vmatprep.subr.bf16.mxu0 0
    %1117 = vmatpush1.bf16.msra.mxu0 %v1045
    %1118 = vmatprep.subr.bf16.mxu0 0
    %1119 = vmatpush1.bf16.msra.mxu0 %v1046
    %1120 = vmatprep.subr.bf16.mxu0 0
    %1121 = vmatpush1.bf16.msra.mxu0 %v1047
    %1122 = vmatprep.subr.bf16.mxu0 0
    %1123 = vmatpush1.bf16.msra.mxu0 %v1048
    %1124 = vmatprep.subr.bf16.mxu0 0
    %1125 = vmatpush1.bf16.msra.mxu0 %v1049
    %1126 = vmatprep.subr.bf16.mxu0 0
    %1127 = vmatpush1.bf16.msra.mxu0 %v1050
    %1128 = vmatprep.subr.bf16.mxu0 0
    %1129 = vmatpush1.bf16.msra.mxu0 %v1051
    %1130 = vmatprep.subr.bf16.mxu0 0
    %1131 = vmatpush1.bf16.msra.mxu0 %v1052
    %1132 = vmatprep.subr.bf16.mxu0 0
    %1133 = vmatpush1.bf16.msra.mxu0 %v1053
    %1134 = vmatprep.mubr.bf16.mxu0 %v903
    %1135 = vmatmul.mubr.bf16.gmra.mrb[0].mxu0 %v902
    %v1136 = vpop.f32.mrb[0].mxu0
    %v1137 = vadd.f32 %v909, %v1136
    %v1138 = vpop.f32.mrb[0].mxu0
    %v1139 = vpop.f32.mrb[0].mxu0
    %v1140 = vpop.f32.mrb[0].mxu0
    %1141 = vdwg.mxu0
    %1142 = vmatprep.subr.bf16.mxu0 0
    %1143 = vmatpush1.bf16.msra.mxu0 %v1054
    %1144 = vmatprep.subr.bf16.mxu0 0
    %1145 = vmatpush1.bf16.msra.mxu0 %v1055
    %1146 = vmatprep.subr.bf16.mxu0 0
    %1147 = vmatpush1.bf16.msra.mxu0 %v1056
    %1148 = vmatprep.subr.bf16.mxu0 0
    %1149 = vmatpush1.bf16.msra.mxu0 %v1057
    %1150 = vmatprep.subr.bf16.mxu0 0
    %1151 = vmatpush1.bf16.msra.mxu0 %v1058
    %1152 = vmatprep.subr.bf16.mxu0 0
    %1153 = vmatpush1.bf16.msra.mxu0 %v1059
    %1154 = vmatprep.subr.bf16.mxu0 0
    %1155 = vmatpush1.bf16.msra.mxu0 %v1060
    %1156 = vmatprep.subr.bf16.mxu0 0
    %1157 = vmatpush1.bf16.msra.mxu0 %v1061
    %1158 = vmatprep.subr.bf16.mxu0 0
    %1159 = vmatpush1.bf16.msra.mxu0 %v1062
    %1160 = vmatprep.subr.bf16.mxu0 0
    %1161 = vmatpush1.bf16.msra.mxu0 %v1063
    %1162 = vmatprep.subr.bf16.mxu0 0
    %1163 = vmatpush1.bf16.msra.mxu0 %v1064
    %1164 = vmatprep.subr.bf16.mxu0 0
    %1165 = vmatpush1.bf16.msra.mxu0 %v1065
    %1166 = vmatprep.subr.bf16.mxu0 0
    %1167 = vmatpush1.bf16.msra.mxu0 %v1066
    %1168 = vmatprep.subr.bf16.mxu0 0
    %1169 = vmatpush1.bf16.msra.mxu0 %v1067
    %1170 = vmatprep.subr.bf16.mxu0 0
    %1171 = vmatpush1.bf16.msra.mxu0 %v1068
    %1172 = vmatprep.subr.bf16.mxu0 0
    %1173 = vmatpush1.bf16.msra.mxu0 %v1069
    %1174 = vmatprep.mubr.bf16.mxu0 %v905
    %1175 = vmatmul.mubr.bf16.gmra.mrb[0].mxu0 %v904
    %v1176 = vpop.f32.mrb[0].mxu0
    %v1177 = vadd.f32 %v1137, %v1176
    %v1178 = vpop.f32.mrb[0].mxu0
    %v1179 = vpop.f32.mrb[0].mxu0
    %v1180 = vpop.f32.mrb[0].mxu0
    %1181 = vdwg.mxu0
    %v1182 = vadd.f32 %v496, %v1177
    %1183 = vadd.xlane.f32.xlu0 %v1182
    %v1184 = vpop.xlane.xlu0 %1183
    %v1185 = vmul.f32 %v1184, %v196
    %v1186 = vsub.f32 %v1182, %v1185
    %v1187 = vmul.f32 %v1186, %v1186
    %1188 = vadd.xlane.f32.xlu0 %v1187
    %v1189 = vpop.xlane.xlu0 %1188
    %v1190 = vmul.f32 %v1189, %v196
    %v1191 = vadd.f32 %v1190, 1e-05
    %v1192 = vrsqrt.pop %v1191
    %v1193 = vmul.f32 %v1186, %v1192
    %v1194 = vld [vmem:[%s5 + $0xc] sm:$0x1]
    %v1195 = vlaneseq
    %v1196 = vshrl.u32 %v1195, 7
    %v1197 = vsub.s32 0, %v1196
    %v1198 = vrot.slane %v1194, %v1197
    %v1199 = vmul.f32 %v1193, %v1198
    %v1200 = vld [vmem:[%s5 + $0xd] sm:$0x1]
    %v1201 = vlaneseq
    %v1202 = vshrl.u32 %v1201, 7
    %v1203 = vsub.s32 0, %v1202
    %v1204 = vrot.slane %v1200, %v1203
    %v1205 = vadd.f32 %v1199, %v1204
    %s1206 = scalar_lea.vmem [#allocation3], 192
    %v1207 = vld [vmem:[%s1206] sm:$0xf]
    %v1208 = vld [vmem:[%s1206 + $0x4] sm:$0xf]
    %v1209 = vld [vmem:[%s1206 + $0x8] sm:$0xf]
    %v1210 = vld [vmem:[%s1206 + $0xc] sm:$0xf]
    %v1211 = vld [vmem:[%s1206 + $0x10] sm:$0xf]
    %v1212 = vld [vmem:[%s1206 + $0x14] sm:$0xf]
    %v1213 = vld [vmem:[%s1206 + $0x18] sm:$0xf]
    %v1214 = vld [vmem:[%s1206 + $0x1c] sm:$0xf]
    %v1215 = vld [vmem:[%s1206 + $0x20] sm:$0xf]
    %v1216 = vld [vmem:[%s1206 + $0x24] sm:$0xf]
    %v1217 = vld [vmem:[%s1206 + $0x28] sm:$0xf]
    %v1218 = vld [vmem:[%s1206 + $0x2c] sm:$0xf]
    %v1219 = vld [vmem:[%s1206 + $0x30] sm:$0xf]
    %v1220 = vld [vmem:[%s1206 + $0x34] sm:$0xf]
    %v1221 = vld [vmem:[%s1206 + $0x38] sm:$0xf]
    %v1222 = vld [vmem:[%s1206 + $0x3c] sm:$0xf]
    %v1223 = vld [vmem:[%s5 + $0xe] sm:$0x1]
    %v1224 = vpack.c.bf16 %v1205, %v1205
    %v1225 = vlaneseq
    %v1226 = vshrl.u32 %v1225, 7
    %v1227 = vsub.s32 0, %v1226
    %v1228 = vrot.slane %v1223, %v1227
    %v1245 = vunpack.c.l.b16 %v1207
    %v1246 = vunpack.c.l.b16 %v1208
    %v1247 = vunpack.c.l.b16 %v1209
    %v1248 = vunpack.c.l.b16 %v1210
    %v1249 = vunpack.c.l.b16 %v1211
    %v1250 = vunpack.c.l.b16 %v1212
    %v1251 = vunpack.c.l.b16 %v1213
    %v1252 = vunpack.c.l.b16 %v1214
    %v1253 = vunpack.c.l.b16 %v1215
    %v1254 = vunpack.c.l.b16 %v1216
    %v1255 = vunpack.c.l.b16 %v1217
    %v1256 = vunpack.c.l.b16 %v1218
    %v1257 = vunpack.c.l.b16 %v1219
    %v1258 = vunpack.c.l.b16 %v1220
    %v1259 = vunpack.c.l.b16 %v1221
    %v1260 = vunpack.c.l.b16 %v1222
    %v1261 = vpack.c.b16 %v1246, %v1245
    %v1262 = vpack.c.b16 %v1248, %v1247
    %v1263 = vpack.c.b16 %v1250, %v1249
    %v1264 = vpack.c.b16 %v1252, %v1251
    %v1265 = vpack.c.b16 %v1254, %v1253
    %v1266 = vpack.c.b16 %v1256, %v1255
    %v1267 = vpack.c.b16 %v1258, %v1257
    %v1268 = vpack.c.b16 %v1260, %v1259
    %1277 = vmatprep.subr.bf16.mxu0 0
    %1278 = vmatpush1.bf16.msra.mxu0 %v1261
    %1279 = vmatprep.subr.bf16.mxu0 0
    %1280 = vmatpush1.bf16.msra.mxu0 %v1262
    %1281 = vmatprep.subr.bf16.mxu0 0
    %1282 = vmatpush1.bf16.msra.mxu0 %v1263
    %1283 = vmatprep.subr.bf16.mxu0 0
    %1284 = vmatpush1.bf16.msra.mxu0 %v1264
    %1285 = vmatprep.subr.bf16.mxu0 0
    %1286 = vmatpush1.bf16.msra.mxu0 %v1265
    %1287 = vmatprep.subr.bf16.mxu0 0
    %1288 = vmatpush1.bf16.msra.mxu0 %v1266
    %1289 = vmatprep.subr.bf16.mxu0 0
    %1290 = vmatpush1.bf16.msra.mxu0 %v1267
    %1291 = vmatprep.subr.bf16.mxu0 0
    %1292 = vmatpush1.bf16.msra.mxu0 %v1268
    %1293 = vmatprep.subr.bf16.mxu0 0
    %1294 = vmatpush1.bf16.msra.mxu0 0
    %1295 = vmatprep.subr.bf16.mxu0 0
    %1296 = vmatpush1.bf16.msra.mxu0 0
    %1297 = vmatprep.subr.bf16.mxu0 0
    %1298 = vmatpush1.bf16.msra.mxu0 0
    %1299 = vmatprep.subr.bf16.mxu0 0
    %1300 = vmatpush1.bf16.msra.mxu0 0
    %1301 = vmatprep.subr.bf16.mxu0 0
    %1302 = vmatpush1.bf16.msra.mxu0 0
    %1303 = vmatprep.subr.bf16.mxu0 0
    %1304 = vmatpush1.bf16.msra.mxu0 0
    %1305 = vmatprep.subr.bf16.mxu0 0
    %1306 = vmatpush1.bf16.msra.mxu0 0
    %1307 = vmatprep.subr.bf16.mxu0 0
    %1308 = vmatpush1.bf16.msra.mxu0 0
    %1309 = vmatprep.mubr.bf16.mxu0 0
    %1310 = vmatmul.mubr.bf16.gmra.mrb[0].mxu0 %v1224
    %v1311 = vpop.f32.mrb[0].mxu0
    %v1312 = vadd.f32 %v1228, %v1311
    %v1313 = vpop.f32.mrb[0].mxu0
    %v1314 = vpop.f32.mrb[0].mxu0
    %v1315 = vpop.f32.mrb[0].mxu0
    %1316 = vdwg.mxu0
    %v1317 = vadd.f32 %v1182, %v1312
    %1318 = vadd.xlane.f32.xlu0 %v1317
    %v1319 = vpop.xlane.xlu0 %1318
    %v1320 = vmul.f32 %v1319, %v196
    %v1321 = vsub.f32 %v1317, %v1320
    %v1322 = vmul.f32 %v1321, %v1321
    %1323 = vadd.xlane.f32.xlu0 %v1322
    %v1324 = vpop.xlane.xlu0 %1323
    %v1325 = vmul.f32 %v1324, %v196
    %v1326 = vadd.f32 %v1325, 1e-05
    %v1327 = vrsqrt.pop %v1326
    %v1328 = vmul.f32 %v1321, %v1327
    %v1329 = vld [vmem:[%s5 + $0xf] sm:$0x1]
    %v1330 = vlaneseq
    %v1331 = vshrl.u32 %v1330, 7
    %v1332 = vsub.s32 0, %v1331
    %v1333 = vrot.slane %v1329, %v1332
    %v1334 = vmul.f32 %v1328, %v1333
    %v1335 = vld [vmem:[%s5 + $0x10] sm:$0x1]
    %v1336 = vlaneseq
    %v1337 = vshrl.u32 %v1336, 7
    %v1338 = vsub.s32 0, %v1337
    %v1339 = vrot.slane %v1335, %v1338
    %v1340 = vadd.f32 %v1334, %v1339
    %s1341 = scalar_lea.vmem [#allocation6], 256
    %v1342 = vld [vmem:[%s1341] sm:$0xff]
    %v1343 = vld [vmem:[%s1341 + $0x8] sm:$0xff]
    %v1344 = vld [vmem:[%s1341 + $0x10] sm:$0xff]
    %v1345 = vld [vmem:[%s1341 + $0x18] sm:$0xff]
    %v1346 = vld [vmem:[%s1341 + $0x20] sm:$0xff]
    %v1347 = vld [vmem:[%s1341 + $0x28] sm:$0xff]
    %v1348 = vld [vmem:[%s1341 + $0x30] sm:$0xff]
    %v1349 = vld [vmem:[%s1341 + $0x38] sm:$0xff]
    %v1350 = vld [vmem:[%s1341 + $0x40] sm:$0xff]
    %v1351 = vld [vmem:[%s1341 + $0x48] sm:$0xff]
    %v1352 = vld [vmem:[%s1341 + $0x50] sm:$0xff]
    %v1353 = vld [vmem:[%s1341 + $0x58] sm:$0xff]
    %v1354 = vld [vmem:[%s1341 + $0x60] sm:$0xff]
    %v1355 = vld [vmem:[%s1341 + $0x68] sm:$0xff]
    %v1356 = vld [vmem:[%s1341 + $0x70] sm:$0xff]
    %v1357 = vld [vmem:[%s1341 + $0x78] sm:$0xff]
    %v1358 = vld [vmem:[%s1341 + $0x80] sm:$0xff]
    %v1359 = vld [vmem:[%s1341 + $0x88] sm:$0xff]
    %v1360 = vld [vmem:[%s1341 + $0x90] sm:$0xff]
    %v1361 = vld [vmem:[%s1341 + $0x98] sm:$0xff]
    %v1362 = vld [vmem:[%s1341 + $0xa0] sm:$0xff]
    %v1363 = vld [vmem:[%s1341 + $0xa8] sm:$0xff]
    %v1364 = vld [vmem:[%s1341 + $0xb0] sm:$0xff]
    %v1365 = vld [vmem:[%s1341 + $0xb8] sm:$0xff]
    %v1366 = vld [vmem:[%s1341 + $0xc0] sm:$0xff]
    %v1367 = vld [vmem:[%s1341 + $0xc8] sm:$0xff]
    %v1368 = vld [vmem:[%s1341 + $0xd0] sm:$0xff]
    %v1369 = vld [vmem:[%s1341 + $0xd8] sm:$0xff]
    %v1370 = vld [vmem:[%s1341 + $0xe0] sm:$0xff]
    %v1371 = vld [vmem:[%s1341 + $0xe8] sm:$0xff]
    %v1372 = vld [vmem:[%s1341 + $0xf0] sm:$0xff]
    %v1373 = vld [vmem:[%s1341 + $0xf8] sm:$0xff]
    %s1374 = scalar_lea.vmem %s6, 1
    %v1375 = vld [vmem:[%s1374] ss:$2 sm:$0xf]
    %v1376 = vpack.c.bf16 %v1340, %v1340
    %v1378 = vlaneseq
    %v1379 = vshrl.u32 %v1378, 7
    %v1380 = vsub.s32 0, %v1379
    %v1381 = vrot.slane %v1375, %v1380
    %v1382 = vlaneseq
    %v1383 = vshrl.u32 %v1382, 7
    %v1384 = vsub.s32 1, %v1383
    %v1385 = vrot.slane %v1375, %v1384
    %v1386 = vlaneseq
    %v1387 = vshrl.u32 %v1386, 7
    %v1388 = vsub.s32 2, %v1387
    %v1389 = vrot.slane %v1375, %v1388
    %v1390 = vlaneseq
    %v1391 = vshrl.u32 %v1390, 7
    %v1392 = vsub.s32 3, %v1391
    %v1393 = vrot.slane %v1375, %v1392
    %v1430 = vunpack.c.l.b16 %v1342
    %v1431 = vunpack.c.h.b16 %v1342
    %v1432 = vunpack.c.l.b16 %v1343
    %v1433 = vunpack.c.h.b16 %v1343
    %v1434 = vunpack.c.l.b16 %v1344
    %v1435 = vunpack.c.h.b16 %v1344
    %v1436 = vunpack.c.l.b16 %v1345
    %v1437 = vunpack.c.h.b16 %v1345
    %v1438 = vunpack.c.l.b16 %v1346
    %v1439 = vunpack.c.h.b16 %v1346
    %v1440 = vunpack.c.l.b16 %v1347
    %v1441 = vunpack.c.h.b16 %v1347
    %v1442 = vunpack.c.l.b16 %v1348
    %v1443 = vunpack.c.h.b16 %v1348
    %v1444 = vunpack.c.l.b16 %v1349
    %v1445 = vunpack.c.h.b16 %v1349
    %v1446 = vunpack.c.l.b16 %v1350
    %v1447 = vunpack.c.h.b16 %v1350
    %v1448 = vunpack.c.l.b16 %v1351
    %v1449 = vunpack.c.h.b16 %v1351
    %v1450 = vunpack.c.l.b16 %v1352
    %v1451 = vunpack.c.h.b16 %v1352
    %v1452 = vunpack.c.l.b16 %v1353
    %v1453 = vunpack.c.h.b16 %v1353
    %v1454 = vunpack.c.l.b16 %v1354
    %v1455 = vunpack.c.h.b16 %v1354
    %v1456 = vunpack.c.l.b16 %v1355
    %v1457 = vunpack.c.h.b16 %v1355
    %v1458 = vunpack.c.l.b16 %v1356
    %v1459 = vunpack.c.h.b16 %v1356
    %v1460 = vunpack.c.l.b16 %v1357
    %v1461 = vunpack.c.h.b16 %v1357
    %v1462 = vunpack.c.l.b16 %v1358
    %v1463 = vunpack.c.h.b16 %v1358
    %v1464 = vunpack.c.l.b16 %v1359
    %v1465 = vunpack.c.h.b16 %v1359
    %v1466 = vunpack.c.l.b16 %v1360
    %v1467 = vunpack.c.h.b16 %v1360
    %v1468 = vunpack.c.l.b16 %v1361
    %v1469 = vunpack.c.h.b16 %v1361
    %v1470 = vunpack.c.l.b16 %v1362
    %v1471 = vunpack.c.h.b16 %v1362
    %v1472 = vunpack.c.l.b16 %v1363
    %v1473 = vunpack.c.h.b16 %v1363
    %v1474 = vunpack.c.l.b16 %v1364
    %v1475 = vunpack.c.h.b16 %v1364
    %v1476 = vunpack.c.l.b16 %v1365
    %v1477 = vunpack.c.h.b16 %v1365
    %v1478 = vunpack.c.l.b16 %v1366
    %v1479 = vunpack.c.h.b16 %v1366
    %v1480 = vunpack.c.l.b16 %v1367
    %v1481 = vunpack.c.h.b16 %v1367
    %v1482 = vunpack.c.l.b16 %v1368
    %v1483 = vunpack.c.h.b16 %v1368
    %v1484 = vunpack.c.l.b16 %v1369
    %v1485 = vunpack.c.h.b16 %v1369
    %v1486 = vunpack.c.l.b16 %v1370
    %v1487 = vunpack.c.h.b16 %v1370
    %v1488 = vunpack.c.l.b16 %v1371
    %v1489 = vunpack.c.h.b16 %v1371
    %v1490 = vunpack.c.l.b16 %v1372
    %v1491 = vunpack.c.h.b16 %v1372
    %v1492 = vunpack.c.l.b16 %v1373
    %v1493 = vunpack.c.h.b16 %v1373
    %v1494 = vpack.c.b16 %v1434, %v1430
    %v1495 = vpack.c.b16 %v1435, %v1431
    %v1496 = vpack.c.b16 %v1436, %v1432
    %v1497 = vpack.c.b16 %v1437, %v1433
    %v1498 = vpack.c.b16 %v1442, %v1438
    %v1499 = vpack.c.b16 %v1443, %v1439
    %v1500 = vpack.c.b16 %v1444, %v1440
    %v1501 = vpack.c.b16 %v1445, %v1441
    %v1502 = vpack.c.b16 %v1450, %v1446
    %v1503 = vpack.c.b16 %v1451, %v1447
    %v1504 = vpack.c.b16 %v1452, %v1448
    %v1505 = vpack.c.b16 %v1453, %v1449
    %v1506 = vpack.c.b16 %v1458, %v1454
    %v1507 = vpack.c.b16 %v1459, %v1455
    %v1508 = vpack.c.b16 %v1460, %v1456
    %v1509 = vpack.c.b16 %v1461, %v1457
    %v1510 = vpack.c.b16 %v1466, %v1462
    %v1511 = vpack.c.b16 %v1467, %v1463
    %v1512 = vpack.c.b16 %v1468, %v1464
    %v1513 = vpack.c.b16 %v1469, %v1465
    %v1514 = vpack.c.b16 %v1474, %v1470
    %v1515 = vpack.c.b16 %v1475, %v1471
    %v1516 = vpack.c.b16 %v1476, %v1472
    %v1517 = vpack.c.b16 %v1477, %v1473
    %v1518 = vpack.c.b16 %v1482, %v1478
    %v1519 = vpack.c.b16 %v1483, %v1479
    %v1520 = vpack.c.b16 %v1484, %v1480
    %v1521 = vpack.c.b16 %v1485, %v1481
    %v1522 = vpack.c.b16 %v1490, %v1486
    %v1523 = vpack.c.b16 %v1491, %v1487
    %v1524 = vpack.c.b16 %v1492, %v1488
    %v1525 = vpack.c.b16 %v1493, %v1489
    %1558 = vmatprep.subr.bf16.mxu0 %v1495
    %1559 = vmatpush1.bf16.msra.mxu0 %v1494
    %1560 = vmatprep.subr.bf16.mxu0 %v1499
    %1561 = vmatpush1.bf16.msra.mxu0 %v1498
    %1562 = vmatprep.subr.bf16.mxu0 %v1503
    %1563 = vmatpush1.bf16.msra.mxu0 %v1502
    %1564 = vmatprep.subr.bf16.mxu0 %v1507
    %1565 = vmatpush1.bf16.msra.mxu0 %v1506
    %1566 = vmatprep.subr.bf16.mxu0 %v1511
    %1567 = vmatpush1.bf16.msra.mxu0 %v1510
    %1568 = vmatprep.subr.bf16.mxu0 %v1515
    %1569 = vmatpush1.bf16.msra.mxu0 %v1514
    %1570 = vmatprep.subr.bf16.mxu0 %v1519
    %1571 = vmatpush1.bf16.msra.mxu0 %v1518
    %1572 = vmatprep.subr.bf16.mxu0 %v1523
    %1573 = vmatpush1.bf16.msra.mxu0 %v1522
    %1574 = vmatprep.subr.bf16.mxu0 0
    %1575 = vmatpush1.bf16.msra.mxu0 0
    %1576 = vmatprep.subr.bf16.mxu0 0
    %1577 = vmatpush1.bf16.msra.mxu0 0
    %1578 = vmatprep.subr.bf16.mxu0 0
    %1579 = vmatpush1.bf16.msra.mxu0 0
    %1580 = vmatprep.subr.bf16.mxu0 0
    %1581 = vmatpush1.bf16.msra.mxu0 0
    %1582 = vmatprep.subr.bf16.mxu0 0
    %1583 = vmatpush1.bf16.msra.mxu0 0
    %1584 = vmatprep.subr.bf16.mxu0 0
    %1585 = vmatpush1.bf16.msra.mxu0 0
    %1586 = vmatprep.subr.bf16.mxu0 0
    %1587 = vmatpush1.bf16.msra.mxu0 0
    %1588 = vmatprep.subr.bf16.mxu0 0
    %1589 = vmatpush1.bf16.msra.mxu0 0
    %1590 = vmatprep.mubr.bf16.mxu0 0
    %1591 = vmatmul.mubr.bf16.gmra.mrb[0].mxu0 %v1376
    %v1592 = vpop.f32.mrb[0].mxu0
    %v1593 = vadd.f32 %v1381, %v1592
    %v1594 = vpop.f32.mrb[0].mxu0
    %v1595 = vadd.f32 %v1385, %v1594
    %v1596 = vpop.f32.mrb[0].mxu0
    %v1597 = vpop.f32.mrb[0].mxu0
    %1598 = vdwg.mxu0
    %1599 = vmatprep.subr.bf16.mxu0 %v1497
    %1600 = vmatpush1.bf16.msra.mxu0 %v1496
    %1601 = vmatprep.subr.bf16.mxu0 %v1501
    %1602 = vmatpush1.bf16.msra.mxu0 %v1500
    %1603 = vmatprep.subr.bf16.mxu0 %v1505
    %1604 = vmatpush1.bf16.msra.mxu0 %v1504
    %1605 = vmatprep.subr.bf16.mxu0 %v1509
    %1606 = vmatpush1.bf16.msra.mxu0 %v1508
    %1607 = vmatprep.subr.bf16.mxu0 %v1513
    %1608 = vmatpush1.bf16.msra.mxu0 %v1512
    %1609 = vmatprep.subr.bf16.mxu0 %v1517
    %1610 = vmatpush1.bf16.msra.mxu0 %v1516
    %1611 = vmatprep.subr.bf16.mxu0 %v1521
    %1612 = vmatpush1.bf16.msra.mxu0 %v1520
    %1613 = vmatprep.subr.bf16.mxu0 %v1525
    %1614 = vmatpush1.bf16.msra.mxu0 %v1524
    %1615 = vmatprep.subr.bf16.mxu0 0
    %1616 = vmatpush1.bf16.msra.mxu0 0
    %1617 = vmatprep.subr.bf16.mxu0 0
    %1618 = vmatpush1.bf16.msra.mxu0 0
    %1619 = vmatprep.subr.bf16.mxu0 0
    %1620 = vmatpush1.bf16.msra.mxu0 0
    %1621 = vmatprep.subr.bf16.mxu0 0
    %1622 = vmatpush1.bf16.msra.mxu0 0
    %1623 = vmatprep.subr.bf16.mxu0 0
    %1624 = vmatpush1.bf16.msra.mxu0 0
    %1625 = vmatprep.subr.bf16.mxu0 0
    %1626 = vmatpush1.bf16.msra.mxu0 0
    %1627 = vmatprep.subr.bf16.mxu0 0
    %1628 = vmatpush1.bf16.msra.mxu0 0
    %1629 = vmatprep.subr.bf16.mxu0 0
    %1630 = vmatpush1.bf16.msra.mxu0 0
    %1631 = vmatprep.mubr.bf16.mxu0 0
    %1632 = vmatmul.mubr.bf16.gmra.mrb[0].mxu0 %v1376
    %v1633 = vpop.f32.mrb[0].mxu0
    %v1634 = vadd.f32 %v1389, %v1633
    %v1635 = vpop.f32.mrb[0].mxu0
    %v1636 = vadd.f32 %v1393, %v1635
    %v1637 = vpop.f32.mrb[0].mxu0
    %v1638 = vpop.f32.mrb[0].mxu0
    %1639 = vdwg.mxu0
    %v1640 = vmul.f32 %v1593, 0.5
    %v1641 = vmul.f32 %v1595, 0.5
    %v1642 = vmul.f32 %v1634, 0.5
    %v1643 = vmul.f32 %v1636, 0.5
    %v1644 = vmul.f32 %v1593, 0.70710677
    %v1645 = vmul.f32 %v1595, 0.70710677
    %v1646 = vmul.f32 %v1634, 0.70710677
    %v1647 = vmul.f32 %v1636, 0.70710677
    %v1648 = verf.f32.pop %v1644
    %v1649 = verf.f32.pop %v1645
    %v1650 = verf.f32.pop %v1646
    %v1651 = verf.f32.pop %v1647
    %v1652 = vadd.f32 %v1648, 1.0
    %v1653 = vadd.f32 %v1649, 1.0
    %v1654 = vadd.f32 %v1650, 1.0
    %v1655 = vadd.f32 %v1651, 1.0
    %v1656 = vmul.f32 %v1640, %v1652
    %v1657 = vmul.f32 %v1641, %v1653
    %v1658 = vmul.f32 %v1642, %v1654
    %v1659 = vmul.f32 %v1643, %v1655
    %s1660 = scalar_lea.vmem [#allocation8], 256
    %v1661 = vld [vmem:[%s1660] sm:$0xf]
    %v1662 = vld [vmem:[%s1660 + $0x4] sm:$0xf]
    %v1663 = vld [vmem:[%s1660 + $0x8] sm:$0xf]
    %v1664 = vld [vmem:[%s1660 + $0xc] sm:$0xf]
    %v1665 = vld [vmem:[%s1660 + $0x10] sm:$0xf]
    %v1666 = vld [vmem:[%s1660 + $0x14] sm:$0xf]
    %v1667 = vld [vmem:[%s1660 + $0x18] sm:$0xf]
    %v1668 = vld [vmem:[%s1660 + $0x1c] sm:$0xf]
    %v1669 = vld [vmem:[%s1660 + $0x20] sm:$0xf]
    %v1670 = vld [vmem:[%s1660 + $0x24] sm:$0xf]
    %v1671 = vld [vmem:[%s1660 + $0x28] sm:$0xf]
    %v1672 = vld [vmem:[%s1660 + $0x2c] sm:$0xf]
    %v1673 = vld [vmem:[%s1660 + $0x30] sm:$0xf]
    %v1674 = vld [vmem:[%s1660 + $0x34] sm:$0xf]
    %v1675 = vld [vmem:[%s1660 + $0x38] sm:$0xf]
    %v1676 = vld [vmem:[%s1660 + $0x3c] sm:$0xf]
    %v1677 = vld [vmem:[%s1660 + $0x40] sm:$0xf]
    %v1678 = vld [vmem:[%s1660 + $0x44] sm:$0xf]
    %v1679 = vld [vmem:[%s1660 + $0x48] sm:$0xf]
    %v1680 = vld [vmem:[%s1660 + $0x4c] sm:$0xf]
    %v1681 = vld [vmem:[%s1660 + $0x50] sm:$0xf]
    %v1682 = vld [vmem:[%s1660 + $0x54] sm:$0xf]
    %v1683 = vld [vmem:[%s1660 + $0x58] sm:$0xf]
    %v1684 = vld [vmem:[%s1660 + $0x5c] sm:$0xf]
    %v1685 = vld [vmem:[%s1660 + $0x60] sm:$0xf]
    %v1686 = vld [vmem:[%s1660 + $0x64] sm:$0xf]
    %v1687 = vld [vmem:[%s1660 + $0x68] sm:$0xf]
    %v1688 = vld [vmem:[%s1660 + $0x6c] sm:$0xf]
    %v1689 = vld [vmem:[%s1660 + $0x70] sm:$0xf]
    %v1690 = vld [vmem:[%s1660 + $0x74] sm:$0xf]
    %v1691 = vld [vmem:[%s1660 + $0x78] sm:$0xf]
    %v1692 = vld [vmem:[%s1660 + $0x7c] sm:$0xf]
    %v1693 = vld [vmem:[%s1660 + $0x80] sm:$0xf]
    %v1694 = vld [vmem:[%s1660 + $0x84] sm:$0xf]
    %v1695 = vld [vmem:[%s1660 + $0x88] sm:$0xf]
    %v1696 = vld [vmem:[%s1660 + $0x8c] sm:$0xf]
    %v1697 = vld [vmem:[%s1660 + $0x90] sm:$0xf]
    %v1698 = vld [vmem:[%s1660 + $0x94] sm:$0xf]
    %v1699 = vld [vmem:[%s1660 + $0x98] sm:$0xf]
    %v1700 = vld [vmem:[%s1660 + $0x9c] sm:$0xf]
    %v1701 = vld [vmem:[%s1660 + $0xa0] sm:$0xf]
    %v1702 = vld [vmem:[%s1660 + $0xa4] sm:$0xf]
    %v1703 = vld [vmem:[%s1660 + $0xa8] sm:$0xf]
    %v1704 = vld [vmem:[%s1660 + $0xac] sm:$0xf]
    %v1705 = vld [vmem:[%s1660 + $0xb0] sm:$0xf]
    %v1706 = vld [vmem:[%s1660 + $0xb4] sm:$0xf]
    %v1707 = vld [vmem:[%s1660 + $0xb8] sm:$0xf]
    %v1708 = vld [vmem:[%s1660 + $0xbc] sm:$0xf]
    %v1709 = vld [vmem:[%s1660 + $0xc0] sm:$0xf]
    %v1710 = vld [vmem:[%s1660 + $0xc4] sm:$0xf]
    %v1711 = vld [vmem:[%s1660 + $0xc8] sm:$0xf]
    %v1712 = vld [vmem:[%s1660 + $0xcc] sm:$0xf]
    %v1713 = vld [vmem:[%s1660 + $0xd0] sm:$0xf]
    %v1714 = vld [vmem:[%s1660 + $0xd4] sm:$0xf]
    %v1715 = vld [vmem:[%s1660 + $0xd8] sm:$0xf]
    %v1716 = vld [vmem:[%s1660 + $0xdc] sm:$0xf]
    %v1717 = vld [vmem:[%s1660 + $0xe0] sm:$0xf]
    %v1718 = vld [vmem:[%s1660 + $0xe4] sm:$0xf]
    %v1719 = vld [vmem:[%s1660 + $0xe8] sm:$0xf]
    %v1720 = vld [vmem:[%s1660 + $0xec] sm:$0xf]
    %v1721 = vld [vmem:[%s1660 + $0xf0] sm:$0xf]
    %v1722 = vld [vmem:[%s1660 + $0xf4] sm:$0xf]
    %v1723 = vld [vmem:[%s1660 + $0xf8] sm:$0xf]
    %v1724 = vld [vmem:[%s1660 + $0xfc] sm:$0xf]
    %v1725 = vld [vmem:[%s5 + $0x11] sm:$0x1]
    %v1726 = vpack.c.bf16 %v1656, %v1656
    %v1727 = vpack.c.bf16 %v1657, %v1657
    %v1728 = vpack.c.bf16 %v1658, %v1658
    %v1729 = vpack.c.bf16 %v1659, %v1659
    %v1730 = vlaneseq
    %v1731 = vshrl.u32 %v1730, 7
    %v1732 = vsub.s32 0, %v1731
    %v1733 = vrot.slane %v1725, %v1732
    %v1798 = vunpack.c.l.b16 %v1661
    %v1799 = vunpack.c.l.b16 %v1662
    %v1800 = vunpack.c.l.b16 %v1663
    %v1801 = vunpack.c.l.b16 %v1664
    %v1802 = vunpack.c.l.b16 %v1665
    %v1803 = vunpack.c.l.b16 %v1666
    %v1804 = vunpack.c.l.b16 %v1667
    %v1805 = vunpack.c.l.b16 %v1668
    %v1806 = vunpack.c.l.b16 %v1669
    %v1807 = vunpack.c.l.b16 %v1670
    %v1808 = vunpack.c.l.b16 %v1671
    %v1809 = vunpack.c.l.b16 %v1672
    %v1810 = vunpack.c.l.b16 %v1673
    %v1811 = vunpack.c.l.b16 %v1674
    %v1812 = vunpack.c.l.b16 %v1675
    %v1813 = vunpack.c.l.b16 %v1676
    %v1814 = vunpack.c.l.b16 %v1677
    %v1815 = vunpack.c.l.b16 %v1678
    %v1816 = vunpack.c.l.b16 %v1679
    %v1817 = vunpack.c.l.b16 %v1680
    %v1818 = vunpack.c.l.b16 %v1681
    %v1819 = vunpack.c.l.b16 %v1682
    %v1820 = vunpack.c.l.b16 %v1683
    %v1821 = vunpack.c.l.b16 %v1684
    %v1822 = vunpack.c.l.b16 %v1685
    %v1823 = vunpack.c.l.b16 %v1686
    %v1824 = vunpack.c.l.b16 %v1687
    %v1825 = vunpack.c.l.b16 %v1688
    %v1826 = vunpack.c.l.b16 %v1689
    %v1827 = vunpack.c.l.b16 %v1690
    %v1828 = vunpack.c.l.b16 %v1691
    %v1829 = vunpack.c.l.b16 %v1692
    %v1830 = vunpack.c.l.b16 %v1693
    %v1831 = vunpack.c.l.b16 %v1694
    %v1832 = vunpack.c.l.b16 %v1695
    %v1833 = vunpack.c.l.b16 %v1696
    %v1834 = vunpack.c.l.b16 %v1697
    %v1835 = vunpack.c.l.b16 %v1698
    %v1836 = vunpack.c.l.b16 %v1699
    %v1837 = vunpack.c.l.b16 %v1700
    %v1838 = vunpack.c.l.b16 %v1701
    %v1839 = vunpack.c.l.b16 %v1702
    %v1840 = vunpack.c.l.b16 %v1703
    %v1841 = vunpack.c.l.b16 %v1704
    %v1842 = vunpack.c.l.b16 %v1705
    %v1843 = vunpack.c.l.b16 %v1706
    %v1844 = vunpack.c.l.b16 %v1707
    %v1845 = vunpack.c.l.b16 %v1708
    %v1846 = vunpack.c.l.b16 %v1709
    %v1847 = vunpack.c.l.b16 %v1710
    %v1848 = vunpack.c.l.b16 %v1711
    %v1849 = vunpack.c.l.b16 %v1712
    %v1850 = vunpack.c.l.b16 %v1713
    %v1851 = vunpack.c.l.b16 %v1714
    %v1852 = vunpack.c.l.b16 %v1715
    %v1853 = vunpack.c.l.b16 %v1716
    %v1854 = vunpack.c.l.b16 %v1717
    %v1855 = vunpack.c.l.b16 %v1718
    %v1856 = vunpack.c.l.b16 %v1719
    %v1857 = vunpack.c.l.b16 %v1720
    %v1858 = vunpack.c.l.b16 %v1721
    %v1859 = vunpack.c.l.b16 %v1722
    %v1860 = vunpack.c.l.b16 %v1723
    %v1861 = vunpack.c.l.b16 %v1724
    %v1862 = vpack.c.b16 %v1799, %v1798
    %v1863 = vpack.c.b16 %v1801, %v1800
    %v1864 = vpack.c.b16 %v1803, %v1802
    %v1865 = vpack.c.b16 %v1805, %v1804
    %v1866 = vpack.c.b16 %v1807, %v1806
    %v1867 = vpack.c.b16 %v1809, %v1808
    %v1868 = vpack.c.b16 %v1811, %v1810
    %v1869 = vpack.c.b16 %v1813, %v1812
    %v1870 = vpack.c.b16 %v1815, %v1814
    %v1871 = vpack.c.b16 %v1817, %v1816
    %v1872 = vpack.c.b16 %v1819, %v1818
    %v1873 = vpack.c.b16 %v1821, %v1820
    %v1874 = vpack.c.b16 %v1823, %v1822
    %v1875 = vpack.c.b16 %v1825, %v1824
    %v1876 = vpack.c.b16 %v1827, %v1826
    %v1877 = vpack.c.b16 %v1829, %v1828
    %v1878 = vpack.c.b16 %v1831, %v1830
    %v1879 = vpack.c.b16 %v1833, %v1832
    %v1880 = vpack.c.b16 %v1835, %v1834
    %v1881 = vpack.c.b16 %v1837, %v1836
    %v1882 = vpack.c.b16 %v1839, %v1838
    %v1883 = vpack.c.b16 %v1841, %v1840
    %v1884 = vpack.c.b16 %v1843, %v1842
    %v1885 = vpack.c.b16 %v1845, %v1844
    %v1886 = vpack.c.b16 %v1847, %v1846
    %v1887 = vpack.c.b16 %v1849, %v1848
    %v1888 = vpack.c.b16 %v1851, %v1850
    %v1889 = vpack.c.b16 %v1853, %v1852
    %v1890 = vpack.c.b16 %v1855, %v1854
    %v1891 = vpack.c.b16 %v1857, %v1856
    %v1892 = vpack.c.b16 %v1859, %v1858
    %v1893 = vpack.c.b16 %v1861, %v1860
    %1926 = vmatprep.subr.bf16.mxu0 0
    %1927 = vmatpush1.bf16.msra.mxu0 %v1862
    %1928 = vmatprep.subr.bf16.mxu0 0
    %1929 = vmatpush1.bf16.msra.mxu0 %v1863
    %1930 = vmatprep.subr.bf16.mxu0 0
    %1931 = vmatpush1.bf16.msra.mxu0 %v1864
    %1932 = vmatprep.subr.bf16.mxu0 0
    %1933 = vmatpush1.bf16.msra.mxu0 %v1865
    %1934 = vmatprep.subr.bf16.mxu0 0
    %1935 = vmatpush1.bf16.msra.mxu0 %v1866
    %1936 = vmatprep.subr.bf16.mxu0 0
    %1937 = vmatpush1.bf16.msra.mxu0 %v1867
    %1938 = vmatprep.subr.bf16.mxu0 0
    %1939 = vmatpush1.bf16.msra.mxu0 %v1868
    %1940 = vmatprep.subr.bf16.mxu0 0
    %1941 = vmatpush1.bf16.msra.mxu0 %v1869
    %1942 = vmatprep.subr.bf16.mxu0 0
    %1943 = vmatpush1.bf16.msra.mxu0 %v1870
    %1944 = vmatprep.subr.bf16.mxu0 0
    %1945 = vmatpush1.bf16.msra.mxu0 %v1871
    %1946 = vmatprep.subr.bf16.mxu0 0
    %1947 = vmatpush1.bf16.msra.mxu0 %v1872
    %1948 = vmatprep.subr.bf16.mxu0 0
    %1949 = vmatpush1.bf16.msra.mxu0 %v1873
    %1950 = vmatprep.subr.bf16.mxu0 0
    %1951 = vmatpush1.bf16.msra.mxu0 %v1874
    %1952 = vmatprep.subr.bf16.mxu0 0
    %1953 = vmatpush1.bf16.msra.mxu0 %v1875
    %1954 = vmatprep.subr.bf16.mxu0 0
    %1955 = vmatpush1.bf16.msra.mxu0 %v1876
    %1956 = vmatprep.subr.bf16.mxu0 0
    %1957 = vmatpush1.bf16.msra.mxu0 %v1877
    %1958 = vmatprep.mubr.bf16.mxu0 %v1727
    %1959 = vmatmul.mubr.bf16.gmra.mrb[0].mxu0 %v1726
    %v1960 = vpop.f32.mrb[0].mxu0
    %v1961 = vadd.f32 %v1733, %v1960
    %v1962 = vpop.f32.mrb[0].mxu0
    %v1963 = vpop.f32.mrb[0].mxu0
    %v1964 = vpop.f32.mrb[0].mxu0
    %1965 = vdwg.mxu0
    %1966 = vmatprep.subr.bf16.mxu0 0
    %1967 = vmatpush1.bf16.msra.mxu0 %v1878
    %1968 = vmatprep.subr.bf16.mxu0 0
    %1969 = vmatpush1.bf16.msra.mxu0 %v1879
    %1970 = vmatprep.subr.bf16.mxu0 0
    %1971 = vmatpush1.bf16.msra.mxu0 %v1880
    %1972 = vmatprep.subr.bf16.mxu0 0
    %1973 = vmatpush1.bf16.msra.mxu0 %v1881
    %1974 = vmatprep.subr.bf16.mxu0 0
    %1975 = vmatpush1.bf16.msra.mxu0 %v1882
    %1976 = vmatprep.subr.bf16.mxu0 0
    %1977 = vmatpush1.bf16.msra.mxu0 %v1883
    %1978 = vmatprep.subr.bf16.mxu0 0
    %1979 = vmatpush1.bf16.msra.mxu0 %v1884
    %1980 = vmatprep.subr.bf16.mxu0 0
    %1981 = vmatpush1.bf16.msra.mxu0 %v1885
    %1982 = vmatprep.subr.bf16.mxu0 0
    %1983 = vmatpush1.bf16.msra.mxu0 %v1886
    %1984 = vmatprep.subr.bf16.mxu0 0
    %1985 = vmatpush1.bf16.msra.mxu0 %v1887
    %1986 = vmatprep.subr.bf16.mxu0 0
    %1987 = vmatpush1.bf16.msra.mxu0 %v1888
    %1988 = vmatprep.subr.bf16.mxu0 0
    %1989 = vmatpush1.bf16.msra.mxu0 %v1889
    %1990 = vmatprep.subr.bf16.mxu0 0
    %1991 = vmatpush1.bf16.msra.mxu0 %v1890
    %1992 = vmatprep.subr.bf16.mxu0 0
    %1993 = vmatpush1.bf16.msra.mxu0 %v1891
    %1994 = vmatprep.subr.bf16.mxu0 0
    %1995 = vmatpush1.bf16.msra.mxu0 %v1892
    %1996 = vmatprep.subr.bf16.mxu0 0
    %1997 = vmatpush1.bf16.msra.mxu0 %v1893
    %1998 = vmatprep.mubr.bf16.mxu0 %v1729
    %1999 = vmatmul.mubr.bf16.gmra.mrb[0].mxu0 %v1728
    %v2000 = vpop.f32.mrb[0].mxu0
    %v2001 = vadd.f32 %v1961, %v2000
    %v2002 = vpop.f32.mrb[0].mxu0
    %v2003 = vpop.f32.mrb[0].mxu0
    %v2004 = vpop.f32.mrb[0].mxu0
    %2005 = vdwg.mxu0
    %v2006 = vadd.f32 %v1317, %v2001
    %2007 = vadd.xlane.f32.xlu0 %v2006
    %v2008 = vpop.xlane.xlu0 %2007
    %v2009 = vmul.f32 %v2008, %v196
    %v2010 = vsub.f32 %v2006, %v2009
    %v2011 = vmul.f32 %v2010, %v2010
    %2012 = vadd.xlane.f32.xlu0 %v2011
    %v2013 = vpop.xlane.xlu0 %2012
    %v2014 = vmul.f32 %v2013, %v196
    %v2015 = vadd.f32 %v2014, 1e-05
    %v2016 = vrsqrt.pop %v2015
    %v2017 = vmul.f32 %v2010, %v2016
    %v2018 = vld [vmem:[%s5 + $0x12] sm:$0x1]
    %v2019 = vlaneseq
    %v2020 = vshrl.u32 %v2019, 7
    %v2021 = vsub.s32 0, %v2020
    %v2022 = vrot.slane %v2018, %v2021
    %v2023 = vmul.f32 %v2017, %v2022
    %v2024 = vld [vmem:[%s5 + $0x13] sm:$0x1]
    %v2025 = vlaneseq
    %v2026 = vshrl.u32 %v2025, 7
    %v2027 = vsub.s32 0, %v2026
    %v2028 = vrot.slane %v2024, %v2027
    %v2029 = vadd.f32 %v2023, %v2028
    %v2030 = vpack.c.bf16 %v361, %v361
    %2031 = vst [vmem:[#allocation2] sm:$0xf] %v2030
    %v2032 = vpack.c.bf16 %v2029, %v2029
    %2033 = vst [vmem:[#allocation2 + $0x4] sm:$0xf] %v2032
    %v2034 = vld [vmem:[#allocation2] sm:$0xff]
    %v2035 = vld [vmem:[#allocation9] sm:$0xf]
    %v2036 = vld [vmem:[#allocation9 + $0x4] sm:$0xf]
    %v2037 = vld [vmem:[#allocation9 + $0x8] sm:$0xf]
    %v2038 = vld [vmem:[#allocation9 + $0xc] sm:$0xf]
    %v2039 = vld [vmem:[#allocation9 + $0x10] sm:$0xf]
    %v2040 = vld [vmem:[#allocation9 + $0x14] sm:$0xf]
    %v2041 = vld [vmem:[#allocation9 + $0x18] sm:$0xf]
    %v2042 = vld [vmem:[#allocation9 + $0x1c] sm:$0xf]
    %v2043 = vld [vmem:[#allocation9 + $0x20] sm:$0xf]
    %v2044 = vld [vmem:[#allocation9 + $0x24] sm:$0xf]
    %v2045 = vld [vmem:[#allocation9 + $0x28] sm:$0xf]
    %v2046 = vld [vmem:[#allocation9 + $0x2c] sm:$0xf]
    %v2047 = vld [vmem:[#allocation9 + $0x30] sm:$0xf]
    %v2048 = vld [vmem:[#allocation9 + $0x34] sm:$0xf]
    %v2049 = vld [vmem:[#allocation9 + $0x38] sm:$0xf]
    %v2050 = vld [vmem:[#allocation9 + $0x3c] sm:$0xf]
    %v2051 = vld [vmem:[#allocation9 + $0x40] sm:$0xf]
    %v2052 = vld [vmem:[#allocation9 + $0x44] sm:$0xf]
    %v2053 = vld [vmem:[#allocation9 + $0x48] sm:$0xf]
    %v2054 = vld [vmem:[#allocation9 + $0x4c] sm:$0xf]
    %v2055 = vld [vmem:[#allocation9 + $0x50] sm:$0xf]
    %v2056 = vld [vmem:[#allocation9 + $0x54] sm:$0xf]
    %v2057 = vld [vmem:[#allocation9 + $0x58] sm:$0xf]
    %v2058 = vld [vmem:[#allocation9 + $0x5c] sm:$0xf]
    %v2059 = vld [vmem:[#allocation9 + $0x60] sm:$0xf]
    %v2060 = vld [vmem:[#allocation9 + $0x64] sm:$0xf]
    %v2061 = vld [vmem:[#allocation9 + $0x68] sm:$0xf]
    %v2062 = vld [vmem:[#allocation9 + $0x6c] sm:$0xf]
    %v2063 = vld [vmem:[#allocation9 + $0x70] sm:$0xf]
    %v2064 = vld [vmem:[#allocation9 + $0x74] sm:$0xf]
    %v2065 = vld [vmem:[#allocation9 + $0x78] sm:$0xf]
    %v2066 = vld [vmem:[#allocation9 + $0x7c] sm:$0xf]
    %v2067 = vld [vmem:[%s5 + $0x14] sm:$0x1]
    %v2068 = vlaneseq
    %v2069 = vshrl.u32 %v2068, 7
    %v2070 = vsub.s32 0, %v2069
    %v2071 = vrot.slane %v2067, %v2070
    %v2073 = vunpack.c.l.b16 %v2034
    %v2074 = vunpack.c.h.b16 %v2034
    %v2075 = vpack.c.b16 %v2073, %v2073
    %v2076 = vpack.c.b16 %v2074, %v2074
    %v2111 = vunpack.c.l.b16 %v2035
    %v2112 = vunpack.c.l.b16 %v2036
    %v2113 = vunpack.c.l.b16 %v2037
    %v2114 = vunpack.c.l.b16 %v2038
    %v2115 = vunpack.c.l.b16 %v2039
    %v2116 = vunpack.c.l.b16 %v2040
    %v2117 = vunpack.c.l.b16 %v2041
    %v2118 = vunpack.c.l.b16 %v2042
    %v2119 = vunpack.c.l.b16 %v2043
    %v2120 = vunpack.c.l.b16 %v2044
    %v2121 = vunpack.c.l.b16 %v2045
    %v2122 = vunpack.c.l.b16 %v2046
    %v2123 = vunpack.c.l.b16 %v2047
    %v2124 = vunpack.c.l.b16 %v2048
    %v2125 = vunpack.c.l.b16 %v2049
    %v2126 = vunpack.c.l.b16 %v2050
    %v2127 = vunpack.c.l.b16 %v2051
    %v2128 = vunpack.c.l.b16 %v2052
    %v2129 = vunpack.c.l.b16 %v2053
    %v2130 = vunpack.c.l.b16 %v2054
    %v2131 = vunpack.c.l.b16 %v2055
    %v2132 = vunpack.c.l.b16 %v2056
    %v2133 = vunpack.c.l.b16 %v2057
    %v2134 = vunpack.c.l.b16 %v2058
    %v2135 = vunpack.c.l.b16 %v2059
    %v2136 = vunpack.c.l.b16 %v2060
    %v2137 = vunpack.c.l.b16 %v2061
    %v2138 = vunpack.c.l.b16 %v2062
    %v2139 = vunpack.c.l.b16 %v2063
    %v2140 = vunpack.c.l.b16 %v2064
    %v2141 = vunpack.c.l.b16 %v2065
    %v2142 = vunpack.c.l.b16 %v2066
    %v2143 = vpack.c.b16 %v2112, %v2111
    %v2144 = vpack.c.b16 %v2114, %v2113
    %v2145 = vpack.c.b16 %v2116, %v2115
    %v2146 = vpack.c.b16 %v2118, %v2117
    %v2147 = vpack.c.b16 %v2120, %v2119
    %v2148 = vpack.c.b16 %v2122, %v2121
    %v2149 = vpack.c.b16 %v2124, %v2123
    %v2150 = vpack.c.b16 %v2126, %v2125
    %v2151 = vpack.c.b16 %v2128, %v2127
    %v2152 = vpack.c.b16 %v2130, %v2129
    %v2153 = vpack.c.b16 %v2132, %v2131
    %v2154 = vpack.c.b16 %v2134, %v2133
    %v2155 = vpack.c.b16 %v2136, %v2135
    %v2156 = vpack.c.b16 %v2138, %v2137
    %v2157 = vpack.c.b16 %v2140, %v2139
    %v2158 = vpack.c.b16 %v2142, %v2141
    %2175 = vmatprep.subr.bf16.mxu0 0
    %2176 = vmatpush1.bf16.msra.mxu0 %v2143
    %2177 = vmatprep.subr.bf16.mxu0 0
    %2178 = vmatpush1.bf16.msra.mxu0 %v2144
    %2179 = vmatprep.subr.bf16.mxu0 0
    %2180 = vmatpush1.bf16.msra.mxu0 %v2145
    %2181 = vmatprep.subr.bf16.mxu0 0
    %2182 = vmatpush1.bf16.msra.mxu0 %v2146
    %2183 = vmatprep.subr.bf16.mxu0 0
    %2184 = vmatpush1.bf16.msra.mxu0 %v2147
    %2185 = vmatprep.subr.bf16.mxu0 0
    %2186 = vmatpush1.bf16.msra.mxu0 %v2148
    %2187 = vmatprep.subr.bf16.mxu0 0
    %2188 = vmatpush1.bf16.msra.mxu0 %v2149
    %2189 = vmatprep.subr.bf16.mxu0 0
    %2190 = vmatpush1.bf16.msra.mxu0 %v2150
    %2191 = vmatprep.subr.bf16.mxu0 0
    %2192 = vmatpush1.bf16.msra.mxu0 %v2151
    %2193 = vmatprep.subr.bf16.mxu0 0
    %2194 = vmatpush1.bf16.msra.mxu0 %v2152
    %2195 = vmatprep.subr.bf16.mxu0 0
    %2196 = vmatpush1.bf16.msra.mxu0 %v2153
    %2197 = vmatprep.subr.bf16.mxu0 0
    %2198 = vmatpush1.bf16.msra.mxu0 %v2154
    %2199 = vmatprep.subr.bf16.mxu0 0
    %2200 = vmatpush1.bf16.msra.mxu0 %v2155
    %2201 = vmatprep.subr.bf16.mxu0 0
    %2202 = vmatpush1.bf16.msra.mxu0 %v2156
    %2203 = vmatprep.subr.bf16.mxu0 0
    %2204 = vmatpush1.bf16.msra.mxu0 %v2157
    %2205 = vmatprep.subr.bf16.mxu0 0
    %2206 = vmatpush1.bf16.msra.mxu0 %v2158
    %2207 = vmatprep.mubr.bf16.mxu0 %v2076
    %2208 = vmatmul.mubr.bf16.gmra.mrb[0].mxu0 %v2075
    %v2209 = vpop.f32.mrb[0].mxu0
    %v2210 = vadd.f32 %v2071, %v2209
    %v2211 = vpop.f32.mrb[0].mxu0
    %v2212 = vpop.f32.mrb[0].mxu0
    %v2213 = vpop.f32.mrb[0].mxu0
    %2214 = vdwg.mxu0
    %2215 = vadd.xlane.f32.xlu0 %v2210
    %v2216 = vpop.xlane.xlu0 %2215
    %v2217 = vmul.f32 %v2216, %v196
    %v2218 = vsub.f32 %v2210, %v2217
    %v2219 = vmul.f32 %v2218, %v2218
    %2220 = vadd.xlane.f32.xlu0 %v2219
    %v2221 = vpop.xlane.xlu0 %2220
    %v2222 = vmul.f32 %v2221, %v196
    %v2223 = vadd.f32 %v2222, 1e-05
    %v2224 = vrsqrt.pop %v2223
    %v2225 = vmul.f32 %v2218, %v2224
    %v2226 = vld [vmem:[%s5 + $0x15] sm:$0x1]
    %v2227 = vlaneseq
    %v2228 = vshrl.u32 %v2227, 7
    %v2229 = vsub.s32 0, %v2228
    %v2230 = vrot.slane %v2226, %v2229
    %v2231 = vmul.f32 %v2225, %v2230
    %v2232 = vld [vmem:[%s5 + $0x16] sm:$0x1]
    %v2233 = vlaneseq
    %v2234 = vshrl.u32 %v2233, 7
    %v2235 = vsub.s32 0, %v2234
    %v2236 = vrot.slane %v2232, %v2235
    %v2237 = vadd.f32 %v2231, %v2236
    %v2238 = vmul.f32 %v2237, 0.5
    %v2239 = vmul.f32 %v2237, 0.70710677
    %v2240 = verf.f32.pop %v2239
    %v2241 = vadd.f32 %v2240, 1.0
    %v2242 = vmul.f32 %v2238, %v2241
    %2243 = vst [vmem:[#allocation11] sm:$0xff] %v2242
    // Predicated region
    $region46: #{enhanced_steady_path.1} parent=1 // pred_check
      _
    $region47: #{enhanced_steady_path.1} parent=1 // pred_check_branch
      %2245 = sbr.rel (0) target = $region49
    $region48: #{enhanced_steady_path.1} parent=1 // pred_region
      %s2247 = ssub.s32 128, 128
      %2248 = vsyncadd [#allocation5], %s2247
      %s2250 = sshll.u32 [#allocation11], 4
      %s2251 = int_to_ptr.vmem [resolvable:$true] %s2250
      %2253 = dma.vmem_to_hbm [thread:$0]  %s2251, 128, %s7, [#allocation5]
    $region49: #{enhanced_steady_path.1} parent=1 // pred_fallthru
      _
    // Predicated region
    $region50: #{enhanced_steady_path.1} parent=1 // pred_check
      _
    $region51: #{enhanced_steady_path.1} parent=1 // pred_check_branch
      %2255 = sbr.rel (0) target = $region53
    $region52: #{enhanced_steady_path.1} parent=1 // pred_region
      %2256 = dma.done [#allocation5], 128
    $region53: #{enhanced_steady_path.1} parent=1 // pred_fallthru
      _
    %2257 = vsyncpa [#allocation4], 1
    %2258 = vsyncpa [#allocation7], 1
    %2259 = vsyncpa [#allocation10], 1
    %2260 = vsyncpa [#allocation5], 1

</llo_original>
